<compile_context>
chip_gen: v7x
topology: tpu7x:2x2x1
jax: 0.10.0
libtpu: 0.0.40
codegen_flags: <defaults>
</compile_context>

<pallas_src>
import functools
import math

import jax
import jax.numpy as jnp
from jax.experimental import pallas as pl
from jax.experimental.pallas import tpu as pltpu

LOG_SIG_MIN = -20.0
LOG_SIG_MAX = 2.0
TANH_EPS = 1e-6
HALF_LOG_2PI = 0.5 * math.log(2.0 * math.pi)
LANE = 128                      # lane-group width used for all packing/alignment
N_OUT_SECTIONS = 8              # action, mean, log_std, log_prob, std, pre_tanh, task_z, task_z_vars


def _vmem():
    return pl.BlockSpec(memory_space=pltpu.MemorySpace.VMEM)


def _round_up(x, m):
    return ((x + m - 1) // m) * m


# ---------------------------------------------------------------------------
# Fused kernel: encoder MLP + per-task mean/std + policy (tanh-normal sample)
# ---------------------------------------------------------------------------
def pearl_fused_kernel(ctx_ref, obs_ref, noise_ref,
                       we1_ref, we2_ref, we3_ref,
                       w1o_ref, w1z_ref, wp2_ref, wh_ref, bias_ref,
                       out_ref, *, t, n_ctx, b, a_dim, bias_offs):
    f32 = jnp.float32
    latent = we3_ref.shape[1]
    n_rows = t * b

    # All bias slices are at 128-aligned lane offsets in the packed bias array.
    def bias(idx, width):
        off = bias_offs[idx]
        return bias_ref[:, off:off + width]

    # ---- context encoder: 3-layer MLP with ReLU on all t*n_ctx rows ----
    x = ctx_ref[...]                                                   # (t*n_ctx, ctx_dim)
    h = jnp.dot(x, we1_ref[...], preferred_element_type=f32) + bias(0, we1_ref.shape[1])
    h = jnp.maximum(h, 0.0)
    h = jnp.dot(h, we2_ref[...], preferred_element_type=f32) + bias(1, we2_ref.shape[1])
    h = jnp.maximum(h, 0.0)
    params = jnp.dot(h, we3_ref[...], preferred_element_type=f32) + bias(2, latent)   # (t*n_ctx, latent)

    # ---- per-task mean / unbiased std via MXU selection matmuls ----
    # 0/1 selection matrices built from iota (no extra DMA inputs); the cross-
    # sublane reduce and the per-task row broadcast both run on the MXU.
    def sel_mat(nr, nc, group, group_on_cols):
        r = jax.lax.broadcasted_iota(jnp.int32, (nr, nc), 0)
        c = jax.lax.broadcasted_iota(jnp.int32, (nr, nc), 1)
        if group_on_cols:
            lo = r * group
            m = (c >= lo) & (c < lo + group)
        else:
            lo = c * group
            m = (r >= lo) & (r < lo + group)
        return m.astype(f32)

    sel_t_from_ctx = sel_mat(t, t * n_ctx, n_ctx, True)     # (t, t*n_ctx)  sum over each task block
    sel_ctx_from_t = sel_mat(t * n_ctx, t, n_ctx, False)    # (t*n_ctx, t)  expand means back to ctx rows
    sel_row_from_t = sel_mat(n_rows, t, b, False)           # (t*b, t)      repeat per-task row b times

    inv_n = 1.0 / float(n_ctx)
    # torch.std with n=1 returns NaN; mirror that instead of a trace-time ZeroDivisionError.
    inv_nm1 = (1.0 / float(n_ctx - 1)) if n_ctx > 1 else float("nan")

    z_means = jnp.dot(sel_t_from_ctx, params, preferred_element_type=f32) * inv_n      # (t, latent)
    centered = params - jnp.dot(sel_ctx_from_t, z_means, preferred_element_type=f32)   # (t*n_ctx, latent)
    z_std = jnp.sqrt(
        jnp.dot(sel_t_from_ctx, centered * centered, preferred_element_type=f32) * inv_nm1)  # (t, latent)

    task_z = jnp.dot(sel_row_from_t, z_means, preferred_element_type=f32)    # (t*b, latent)
    task_z_std = jnp.dot(sel_row_from_t, z_std, preferred_element_type=f32)  # (t*b, latent)

    # ---- policy trunk: split first matmul so cat([obs, task_z]) never materializes ----
    obs = obs_ref[...]                                                 # (t*b, obs_dim)
    hp = (jnp.dot(obs, w1o_ref[...], preferred_element_type=f32)
          + jnp.dot(task_z, w1z_ref[...], preferred_element_type=f32)
          + bias(3, w1o_ref.shape[1]))
    hp = jnp.maximum(hp, 0.0)
    hp = jnp.dot(hp, wp2_ref[...], preferred_element_type=f32) + bias(4, wp2_ref.shape[1])
    hp = jnp.maximum(hp, 0.0)

    # ---- fused, lane-padded mean / log_std head: one (Hp, 2*128) matmul,
    # sliced at 128-aligned lane offsets ----
    heads = jnp.dot(hp, wh_ref[...], preferred_element_type=f32) + bias(5, wh_ref.shape[1])  # (t*b, 256)
    mean = heads[:, :a_dim]
    log_std = jnp.clip(heads[:, LANE:LANE + a_dim], LOG_SIG_MIN, LOG_SIG_MAX)
    std = jnp.exp(log_std)

    # rsample: pre_tanh = mean + std * N(0,1);  action = tanh(pre_tanh)
    noise = noise_ref[...]                                             # (t*b, a_dim)
    pre_tanh = mean + std * noise
    action = jnp.tanh(pre_tanh)

    # TanhNormal.log_prob = Normal(mean,std).log_prob(pre_tanh) - log(1 - tanh^2 + eps)
    # (pre_tanh - mean)/std == noise exactly, so the Normal term simplifies.
    normal_lp = -0.5 * noise * noise - log_std - HALF_LOG_2PI
    lp = normal_lp - jnp.log(1.0 - action * action + TANH_EPS)
    log_prob = jnp.sum(lp, axis=1, keepdims=True)                      # (t*b, 1)

    # ---- lane-aligned packed output: each section starts at a 128-lane column ----
    out_ref[...] = jnp.zeros_like(out_ref)        # cheap; keeps unused lanes deterministic
    out_ref[:, 0 * LANE:0 * LANE + a_dim] = action
    out_ref[:, 1 * LANE:1 * LANE + a_dim] = mean
    out_ref[:, 2 * LANE:2 * LANE + a_dim] = log_std
    out_ref[:, 3 * LANE:3 * LANE + 1] = log_prob
    out_ref[:, 4 * LANE:4 * LANE + a_dim] = std
    out_ref[:, 5 * LANE:5 * LANE + a_dim] = pre_tanh
    out_ref[:, 6 * LANE:6 * LANE + latent] = task_z
    out_ref[:, 7 * LANE:7 * LANE + latent] = task_z_std


# ---------------------------------------------------------------------------
# PEARLAgent.forward (use_VQ=False, for_update=False path)
# ---------------------------------------------------------------------------
def pearl_agent_forward(obs, context, enc_params, pol_params, noise):
    t, b, obs_dim = obs.shape
    tc, n_ctx, ctx_dim = context.shape
    assert t == tc
    a_dim = noise.shape[1]

    we1, be1, we2, be2, we3, be3 = enc_params
    wp1, bp1, wp2, bp2, wh, bh = pol_params
    latent_dim = we3.shape[1]

    # wh/bh are the lane-padded fused head produced by init_params: (Hp, 2*128).
    assert wh.shape[1] == 2 * LANE and bh.shape[1] == 2 * LANE
    assert a_dim <= LANE and latent_dim <= LANE

    ctx_flat = context.reshape(t * n_ctx, ctx_dim)
    obs_flat = obs.reshape(t * b, obs_dim)

    # Pre-split the first policy weight (no in-kernel weight slicing).
    w1_obs = wp1[:obs_dim, :]
    w1_z = wp1[obs_dim:, :]

    # Pack all six bias rows into ONE array, each bias at a 128-aligned lane offset.
    biases = (be1, be2, be3, bp1, bp2, bh)
    bias_offs = []
    off = 0
    for bb in biases:
        bias_offs.append(off)
        off += _round_up(bb.shape[1], LANE)
    bias_pack = jnp.zeros((1, off), jnp.float32)
    for bb, o in zip(biases, bias_offs):
        bias_pack = bias_pack.at[:, o:o + bb.shape[1]].set(bb)

    n_rows = t * b
    out_w = N_OUT_SECTIONS * LANE

    kernel = functools.partial(
        pearl_fused_kernel,
        t=t, n_ctx=n_ctx, b=b, a_dim=a_dim, bias_offs=tuple(bias_offs))

    # TODO(synk): for real PEARL training sizes (t*b in the thousands), add a
    # row-block grid over the policy section with dimension_semantics=("parallel",)
    # (v7x has 2 TensorCores), keep weights resident via constant index_maps, size
    # tiles against 64 MiB VMEM on v7x, and cast matmul operands to bf16 on v6e/v7x.
    # At these sizes a grid is pure per-step overhead, so the single-shot kernel stays.
    packed = pl.pallas_call(
        kernel,
        out_shape=jax.ShapeDtypeStruct((n_rows, out_w), jnp.float32),
        in_specs=[_vmem()] * 11,
        out_specs=_vmem(),
    )(ctx_flat, obs_flat, noise,
      we1, we2, we3,
      w1_obs, w1_z, wp2, wh, bias_pack)

    # Slice the lane-aligned slab apart (cheap XLA slices at k*128 offsets).
    def sec(k, w):
        return packed[:, k * LANE:k * LANE + w]

    action = sec(0, a_dim)
    mean = sec(1, a_dim)
    log_std = sec(2, a_dim)
    log_prob = sec(3, 1)
    std = sec(4, a_dim)
    pre_tanh = sec(5, a_dim)
    task_z = sec(6, latent_dim)
    task_z_vars = sec(7, latent_dim)

    policy_outputs = (action, mean, log_std, log_prob, std, pre_tanh)
    return policy_outputs, task_z, task_z_vars


# ---------------------------------------------------------------------------
# Deterministic parameter init (synthetic; mirrors module __init__ shapes)
# ---------------------------------------------------------------------------
def init_params(key, ctx_dim, latent_dim, obs_dim, action_dim, enc_hidden, pol_hidden):
    ks = jax.random.split(key, 12)

    def lin(k, fan_in, fan_out):
        bound = 1.0 / math.sqrt(fan_in)
        return jax.random.uniform(k, (fan_in, fan_out), jnp.float32, -bound, bound)

    enc_params = (
        lin(ks[0], ctx_dim, enc_hidden), jnp.zeros((1, enc_hidden), jnp.float32),
        lin(ks[1], enc_hidden, enc_hidden), jnp.zeros((1, enc_hidden), jnp.float32),
        lin(ks[2], enc_hidden, latent_dim), jnp.zeros((1, latent_dim), jnp.float32),
    )
    in_dim = obs_dim + latent_dim
    wm = lin(ks[5], pol_hidden, action_dim)   # mean head
    ws = lin(ks[6], pol_hidden, action_dim)   # log_std head
    # Fuse + lane-pad the two heads once at init time: mean in lanes [0:a_dim],
    # log_std in lanes [128:128+a_dim]; unused lanes are zero and never read.
    wh = jnp.zeros((pol_hidden, 2 * LANE), jnp.float32)
    wh = wh.at[:, :action_dim].set(wm)
    wh = wh.at[:, LANE:LANE + action_dim].set(ws)
    bh = jnp.zeros((1, 2 * LANE), jnp.float32)
    pol_params = (
        lin(ks[3], in_dim, pol_hidden), jnp.zeros((1, pol_hidden), jnp.float32),
        lin(ks[4], pol_hidden, pol_hidden), jnp.zeros((1, pol_hidden), jnp.float32),
        wh, bh,
    )
    # self.W (latent x latent) exists in __init__ but is unused in forward; kept for parity.
    W = jax.random.uniform(ks[7], (latent_dim, latent_dim), jnp.float32)
    return enc_params, pol_params, W


if __name__ == "__main__":
    # TODO(synk): VQ codebook path (use_VQ=True), recurrent encoder hidden state and
    # the for_update extras (commitment_loss / entropies / code / indices) are not
    # exercised by the default forward path and are not implemented here.
    latent_dim = 8
    obs_dim = 16
    action_dim = 4
    ctx_dim = obs_dim + action_dim + 1   # obs + act + reward (use_next_obs_in_context=False)
    enc_hidden = 32
    pol_hidden = 32
    t, b, n_ctx = 2, 8, 8                # tasks, obs-per-task, context transitions per task

    key = jax.random.PRNGKey(0)
    k_obs, k_ctx, k_noise, k_param = jax.random.split(key, 4)

    obs = jax.random.normal(k_obs, (t, b, obs_dim), jnp.float32)
    context = jax.random.normal(k_ctx, (t, n_ctx, ctx_dim), jnp.float32)
    noise = jax.random.normal(k_noise, (t * b, action_dim), jnp.float32)  # reparameterization noise

    enc_params, pol_params, _W = init_params(
        k_param, ctx_dim, latent_dim, obs_dim, action_dim, enc_hidden, pol_hidden)

    fwd = jax.jit(pearl_agent_forward)
    policy_outputs, task_z, task_z_vars = fwd(obs, context, enc_params, pol_params, noise)
    (action, mean, log_std, log_prob, std, pre_tanh) = policy_outputs

    jax.block_until_ready((action, mean, log_std, log_prob, std, pre_tanh, task_z, task_z_vars))

    assert action.shape == (t * b, action_dim)
    assert log_prob.shape == (t * b, 1)
    assert task_z.shape == (t * b, latent_dim)
    assert task_z_vars.shape == (t * b, latent_dim)
    assert bool(jnp.all(jnp.isfinite(action)))
    assert bool(jnp.all(jnp.isfinite(log_prob)))
    assert bool(jnp.all(jnp.isfinite(task_z)))
    assert bool(jnp.all(jnp.isfinite(task_z_vars)))
    print("KERNEL_OK")
</pallas_src>

<mosaic_0001>
module attributes {stable_mosaic.version = 11 : i64} {
  func.func @pearl_fused_kernel(%arg0: memref<16x21xf32, #tpu.memory_space<vmem>>, %arg1: memref<16x16xf32, #tpu.memory_space<vmem>>, %arg2: memref<16x4xf32, #tpu.memory_space<vmem>>, %arg3: memref<21x32xf32, #tpu.memory_space<vmem>>, %arg4: memref<32x32xf32, #tpu.memory_space<vmem>>, %arg5: memref<32x8xf32, #tpu.memory_space<vmem>>, %arg6: memref<16x32xf32, #tpu.memory_space<vmem>>, %arg7: memref<8x32xf32, #tpu.memory_space<vmem>>, %arg8: memref<32x32xf32, #tpu.memory_space<vmem>>, %arg9: memref<32x256xf32, #tpu.memory_space<vmem>>, %arg10: memref<1x896xf32, #tpu.memory_space<vmem>>, %arg11: memref<16x1024xf32, #tpu.memory_space<vmem>>) attributes {dimension_semantics = [], scalar_prefetch = 0 : i64, scratch_operands = 0 : i64, tpu.core_type = #tpu.core_type<tc>} {
    %c0 = arith.constant 0 : index
    %c0_0 = arith.constant 0 : index
    %0 = vector.load %arg0[%c0, %c0_0] : memref<16x21xf32, #tpu.memory_space<vmem>>, vector<16x21xf32>
    %c0_1 = arith.constant 0 : index
    %c0_2 = arith.constant 0 : index
    %1 = vector.load %arg3[%c0_1, %c0_2] : memref<21x32xf32, #tpu.memory_space<vmem>>, vector<21x32xf32>
    %cst = arith.constant dense<0.000000e+00> : vector<16x32xf32>
    %2 = tpu.matmul %0, %1, %cst {dimension_numbers = #tpu.dot_dimension_numbers<[1], [0], [0], [1], [0, 0, 1, 1], [], []>} : vector<16x21xf32>, vector<21x32xf32>, vector<16x32xf32> -> vector<16x32xf32>
    %c0_3 = arith.constant 0 : index
    %c0_4 = arith.constant 0 : index
    %3 = vector.load %arg10[%c0_3, %c0_4] : memref<1x896xf32, #tpu.memory_space<vmem>>, vector<1x32xf32>
    %4 = vector.broadcast %3 : vector<1x32xf32> to vector<16x32xf32>
    %5 = arith.addf %2, %4 : vector<16x32xf32>
    %cst_5 = arith.constant 0.000000e+00 : f32
    %6 = vector.broadcast %cst_5 : f32 to vector<16x32xf32>
    %7 = arith.maximumf %5, %6 : vector<16x32xf32>
    %c0_6 = arith.constant 0 : index
    %c0_7 = arith.constant 0 : index
    %8 = vector.load %arg4[%c0_6, %c0_7] : memref<32x32xf32, #tpu.memory_space<vmem>>, vector<32x32xf32>
    %cst_8 = arith.constant dense<0.000000e+00> : vector<16x32xf32>
    %9 = tpu.matmul %7, %8, %cst_8 {dimension_numbers = #tpu.dot_dimension_numbers<[1], [0], [0], [1], [0, 0, 1, 1], [], []>} : vector<16x32xf32>, vector<32x32xf32>, vector<16x32xf32> -> vector<16x32xf32>
    %c0_9 = arith.constant 0 : index
    %c128 = arith.constant 128 : index
    %10 = vector.load %arg10[%c0_9, %c128] : memref<1x896xf32, #tpu.memory_space<vmem>>, vector<1x32xf32>
    %11 = vector.broadcast %10 : vector<1x32xf32> to vector<16x32xf32>
    %12 = arith.addf %9, %11 : vector<16x32xf32>
    %cst_10 = arith.constant 0.000000e+00 : f32
    %13 = vector.broadcast %cst_10 : f32 to vector<16x32xf32>
    %14 = arith.maximumf %12, %13 : vector<16x32xf32>
    %c0_11 = arith.constant 0 : index
    %c0_12 = arith.constant 0 : index
    %15 = vector.load %arg5[%c0_11, %c0_12] : memref<32x8xf32, #tpu.memory_space<vmem>>, vector<32x8xf32>
    %cst_13 = arith.constant dense<0.000000e+00> : vector<16x8xf32>
    %16 = tpu.matmul %14, %15, %cst_13 {dimension_numbers = #tpu.dot_dimension_numbers<[1], [0], [0], [1], [0, 0, 1, 1], [], []>} : vector<16x32xf32>, vector<32x8xf32>, vector<16x8xf32> -> vector<16x8xf32>
    %c0_14 = arith.constant 0 : index
    %c256 = arith.constant 256 : index
    %17 = vector.load %arg10[%c0_14, %c256] : memref<1x896xf32, #tpu.memory_space<vmem>>, vector<1x8xf32>
    %18 = vector.broadcast %17 : vector<1x8xf32> to vector<16x8xf32>
    %19 = arith.addf %16, %18 : vector<16x8xf32>
    %20 = tpu.iota {dimensions = array<i32: 0>} : vector<2x16xi32>
    %21 = tpu.iota {dimensions = array<i32: 1>} : vector<2x16xi32>
    %c8_i32 = arith.constant 8 : i32
    %22 = vector.broadcast %c8_i32 : i32 to vector<2x16xi32>
    %23 = arith.muli %20, %22 : vector<2x16xi32>
    %24 = arith.cmpi sge, %21, %23 : vector<2x16xi32>
    %c8_i32_15 = arith.constant 8 : i32
    %25 = vector.broadcast %c8_i32_15 : i32 to vector<2x16xi32>
    %26 = arith.addi %23, %25 : vector<2x16xi32>
    %27 = arith.cmpi slt, %21, %26 : vector<2x16xi32>
    %28 = arith.andi %24, %27 : vector<2x16xi1>
    %29 = arith.extui %28 : vector<2x16xi1> to vector<2x16xi32>
    %30 = arith.sitofp %29 : vector<2x16xi32> to vector<2x16xf32>
    %31 = tpu.iota {dimensions = array<i32: 0>} : vector<16x2xi32>
    %32 = tpu.iota {dimensions = array<i32: 1>} : vector<16x2xi32>
    %c8_i32_16 = arith.constant 8 : i32
    %33 = vector.broadcast %c8_i32_16 : i32 to vector<16x2xi32>
    %34 = arith.muli %32, %33 : vector<16x2xi32>
    %35 = arith.cmpi sge, %31, %34 : vector<16x2xi32>
    %c8_i32_17 = arith.constant 8 : i32
    %36 = vector.broadcast %c8_i32_17 : i32 to vector<16x2xi32>
    %37 = arith.addi %34, %36 : vector<16x2xi32>
    %38 = arith.cmpi slt, %31, %37 : vector<16x2xi32>
    %39 = arith.andi %35, %38 : vector<16x2xi1>
    %40 = arith.extui %39 : vector<16x2xi1> to vector<16x2xi32>
    %41 = arith.sitofp %40 : vector<16x2xi32> to vector<16x2xf32>
    %42 = tpu.iota {dimensions = array<i32: 0>} : vector<16x2xi32>
    %43 = tpu.iota {dimensions = array<i32: 1>} : vector<16x2xi32>
    %c8_i32_18 = arith.constant 8 : i32
    %44 = vector.broadcast %c8_i32_18 : i32 to vector<16x2xi32>
    %45 = arith.muli %43, %44 : vector<16x2xi32>
    %46 = arith.cmpi sge, %42, %45 : vector<16x2xi32>
    %c8_i32_19 = arith.constant 8 : i32
    %47 = vector.broadcast %c8_i32_19 : i32 to vector<16x2xi32>
    %48 = arith.addi %45, %47 : vector<16x2xi32>
    %49 = arith.cmpi slt, %42, %48 : vector<16x2xi32>
    %50 = arith.andi %46, %49 : vector<16x2xi1>
    %51 = arith.extui %50 : vector<16x2xi1> to vector<16x2xi32>
    %52 = arith.sitofp %51 : vector<16x2xi32> to vector<16x2xf32>
    %cst_20 = arith.constant dense<0.000000e+00> : vector<2x8xf32>
    %53 = tpu.matmul %30, %19, %cst_20 {dimension_numbers = #tpu.dot_dimension_numbers<[1], [0], [0], [1], [0, 0, 1, 1], [], []>} : vector<2x16xf32>, vector<16x8xf32>, vector<2x8xf32> -> vector<2x8xf32>
    %cst_21 = arith.constant 1.250000e-01 : f32
    %54 = vector.broadcast %cst_21 : f32 to vector<2x8xf32>
    %55 = arith.mulf %53, %54 : vector<2x8xf32>
    %cst_22 = arith.constant dense<0.000000e+00> : vector<16x8xf32>
    %56 = tpu.matmul %41, %55, %cst_22 {dimension_numbers = #tpu.dot_dimension_numbers<[1], [0], [0], [1], [0, 0, 1, 1], [], []>} : vector<16x2xf32>, vector<2x8xf32>, vector<16x8xf32> -> vector<16x8xf32>
    %57 = arith.subf %19, %56 : vector<16x8xf32>
    %58 = arith.mulf %57, %57 : vector<16x8xf32>
    %cst_23 = arith.constant dense<0.000000e+00> : vector<2x8xf32>
    %59 = tpu.matmul %30, %58, %cst_23 {dimension_numbers = #tpu.dot_dimension_numbers<[1], [0], [0], [1], [0, 0, 1, 1], [], []>} : vector<2x16xf32>, vector<16x8xf32>, vector<2x8xf32> -> vector<2x8xf32>
    %cst_24 = arith.constant 0.142857149 : f32
    %60 = vector.broadcast %cst_24 : f32 to vector<2x8xf32>
    %61 = arith.mulf %59, %60 : vector<2x8xf32>
    %62 = math.sqrt %61 : vector<2x8xf32>
    %cst_25 = arith.constant dense<0.000000e+00> : vector<16x8xf32>
    %63 = tpu.matmul %52, %55, %cst_25 {dimension_numbers = #tpu.dot_dimension_numbers<[1], [0], [0], [1], [0, 0, 1, 1], [], []>} : vector<16x2xf32>, vector<2x8xf32>, vector<16x8xf32> -> vector<16x8xf32>
    %cst_26 = arith.constant dense<0.000000e+00> : vector<16x8xf32>
    %64 = tpu.matmul %52, %62, %cst_26 {dimension_numbers = #tpu.dot_dimension_numbers<[1], [0], [0], [1], [0, 0, 1, 1], [], []>} : vector<16x2xf32>, vector<2x8xf32>, vector<16x8xf32> -> vector<16x8xf32>
    %c0_27 = arith.constant 0 : index
    %c0_28 = arith.constant 0 : index
    %65 = vector.load %arg1[%c0_27, %c0_28] : memref<16x16xf32, #tpu.memory_space<vmem>>, vector<16x16xf32>
    %c0_29 = arith.constant 0 : index
    %c0_30 = arith.constant 0 : index
    %66 = vector.load %arg6[%c0_29, %c0_30] : memref<16x32xf32, #tpu.memory_space<vmem>>, vector<16x32xf32>
    %cst_31 = arith.constant dense<0.000000e+00> : vector<16x32xf32>
    %67 = tpu.matmul %65, %66, %cst_31 {dimension_numbers = #tpu.dot_dimension_numbers<[1], [0], [0], [1], [0, 0, 1, 1], [], []>} : vector<16x16xf32>, vector<16x32xf32>, vector<16x32xf32> -> vector<16x32xf32>
    %c0_32 = arith.constant 0 : index
    %c0_33 = arith.constant 0 : index
    %68 = vector.load %arg7[%c0_32, %c0_33] : memref<8x32xf32, #tpu.memory_space<vmem>>, vector<8x32xf32>
    %cst_34 = arith.constant dense<0.000000e+00> : vector<16x32xf32>
    %69 = tpu.matmul %63, %68, %cst_34 {dimension_numbers = #tpu.dot_dimension_numbers<[1], [0], [0], [1], [0, 0, 1, 1], [], []>} : vector<16x8xf32>, vector<8x32xf32>, vector<16x32xf32> -> vector<16x32xf32>
    %70 = arith.addf %67, %69 : vector<16x32xf32>
    %c0_35 = arith.constant 0 : index
    %c384 = arith.constant 384 : index
    %71 = vector.load %arg10[%c0_35, %c384] : memref<1x896xf32, #tpu.memory_space<vmem>>, vector<1x32xf32>
    %72 = vector.broadcast %71 : vector<1x32xf32> to vector<16x32xf32>
    %73 = arith.addf %70, %72 : vector<16x32xf32>
    %cst_36 = arith.constant 0.000000e+00 : f32
    %74 = vector.broadcast %cst_36 : f32 to vector<16x32xf32>
    %75 = arith.maximumf %73, %74 : vector<16x32xf32>
    %c0_37 = arith.constant 0 : index
    %c0_38 = arith.constant 0 : index
    %76 = vector.load %arg8[%c0_37, %c0_38] : memref<32x32xf32, #tpu.memory_space<vmem>>, vector<32x32xf32>
    %cst_39 = arith.constant dense<0.000000e+00> : vector<16x32xf32>
    %77 = tpu.matmul %75, %76, %cst_39 {dimension_numbers = #tpu.dot_dimension_numbers<[1], [0], [0], [1], [0, 0, 1, 1], [], []>} : vector<16x32xf32>, vector<32x32xf32>, vector<16x32xf32> -> vector<16x32xf32>
    %c0_40 = arith.constant 0 : index
    %c512 = arith.constant 512 : index
    %78 = vector.load %arg10[%c0_40, %c512] : memref<1x896xf32, #tpu.memory_space<vmem>>, vector<1x32xf32>
    %79 = vector.broadcast %78 : vector<1x32xf32> to vector<16x32xf32>
    %80 = arith.addf %77, %79 : vector<16x32xf32>
    %cst_41 = arith.constant 0.000000e+00 : f32
    %81 = vector.broadcast %cst_41 : f32 to vector<16x32xf32>
    %82 = arith.maximumf %80, %81 : vector<16x32xf32>
    %c0_42 = arith.constant 0 : index
    %c0_43 = arith.constant 0 : index
    %83 = vector.load %arg9[%c0_42, %c0_43] : memref<32x256xf32, #tpu.memory_space<vmem>>, vector<32x256xf32>
    %cst_44 = arith.constant dense<0.000000e+00> : vector<16x256xf32>
    %84 = tpu.matmul %82, %83, %cst_44 {dimension_numbers = #tpu.dot_dimension_numbers<[1], [0], [0], [1], [0, 0, 1, 1], [], []>} : vector<16x32xf32>, vector<32x256xf32>, vector<16x256xf32> -> vector<16x256xf32>
    %c0_45 = arith.constant 0 : index
    %c640 = arith.constant 640 : index
    %85 = vector.load %arg10[%c0_45, %c640] : memref<1x896xf32, #tpu.memory_space<vmem>>, vector<1x256xf32>
    %86 = vector.broadcast %85 : vector<1x256xf32> to vector<16x256xf32>
    %87 = arith.addf %84, %86 : vector<16x256xf32>
    %88 = vector.extract_strided_slice %87 {offsets = [0, 0], sizes = [16, 4], strides = [1, 1]} : vector<16x256xf32> to vector<16x4xf32>
    %89 = vector.extract_strided_slice %87 {offsets = [0, 128], sizes = [16, 4], strides = [1, 1]} : vector<16x256xf32> to vector<16x4xf32>
    %cst_46 = arith.constant -2.000000e+01 : f32
    %cst_47 = arith.constant 2.000000e+00 : f32
    %90 = vector.broadcast %cst_46 : f32 to vector<16x4xf32>
    %91 = arith.maximumf %90, %89 : vector<16x4xf32>
    %92 = vector.broadcast %cst_47 : f32 to vector<16x4xf32>
    %93 = arith.minimumf %92, %91 : vector<16x4xf32>
    %94 = math.exp %93 : vector<16x4xf32>
    %c0_48 = arith.constant 0 : index
    %c0_49 = arith.constant 0 : index
    %95 = vector.load %arg2[%c0_48, %c0_49] : memref<16x4xf32, #tpu.memory_space<vmem>>, vector<16x4xf32>
    %96 = arith.mulf %94, %95 : vector<16x4xf32>
    %97 = arith.addf %88, %96 : vector<16x4xf32>
    %98 = math.tanh %97 : vector<16x4xf32>
    %cst_50 = arith.constant -5.000000e-01 : f32
    %99 = vector.broadcast %cst_50 : f32 to vector<16x4xf32>
    %100 = arith.mulf %99, %95 : vector<16x4xf32>
    %101 = arith.mulf %100, %95 : vector<16x4xf32>
    %102 = arith.subf %101, %93 : vector<16x4xf32>
    %cst_51 = arith.constant 0.918938517 : f32
    %103 = vector.broadcast %cst_51 : f32 to vector<16x4xf32>
    %104 = arith.subf %102, %103 : vector<16x4xf32>
    %105 = arith.mulf %98, %98 : vector<16x4xf32>
    %cst_52 = arith.constant 1.000000e+00 : f32
    %106 = vector.broadcast %cst_52 : f32 to vector<16x4xf32>
    %107 = arith.subf %106, %105 : vector<16x4xf32>
    %cst_53 = arith.constant 9.99999997E-7 : f32
    %108 = vector.broadcast %cst_53 : f32 to vector<16x4xf32>
    %109 = arith.addf %107, %108 : vector<16x4xf32>
    %110 = math.log %109 : vector<16x4xf32>
    %111 = arith.subf %104, %110 : vector<16x4xf32>
    %cst_54 = arith.constant dense<0.000000e+00> : vector<16xf32>
    %112 = vector.multi_reduction <add>, %111, %cst_54 [1] : vector<16x4xf32> to vector<16xf32>
    %113 = vector.shape_cast %112 : vector<16xf32> to vector<16x1xf32>
    %cst_55 = arith.constant 0.000000e+00 : f32
    %114 = vector.broadcast %cst_55 : f32 to vector<16x1024xf32>
    %c0_56 = arith.constant 0 : index
    %c0_57 = arith.constant 0 : index
    %115 = vector.load %arg11[%c0_56, %c0_57] : memref<16x1024xf32, #tpu.memory_space<vmem>>, vector<16x1024xf32>
    tpu.vector_store %arg11[%c0_56, %c0_57], %114 {strides = array<i32>} : memref<16x1024xf32, #tpu.memory_space<vmem>>, vector<16x1024xf32>,
    %c0_58 = arith.constant 0 : index
    %c0_59 = arith.constant 0 : index
    %116 = vector.load %arg11[%c0_58, %c0_59] : memref<16x1024xf32, #tpu.memory_space<vmem>>, vector<16x4xf32>
    tpu.vector_store %arg11[%c0_58, %c0_59], %98 {strides = array<i32>} : memref<16x1024xf32, #tpu.memory_space<vmem>>, vector<16x4xf32>,
    %c0_60 = arith.constant 0 : index
    %c128_61 = arith.constant 128 : index
    %117 = vector.load %arg11[%c0_60, %c128_61] : memref<16x1024xf32, #tpu.memory_space<vmem>>, vector<16x4xf32>
    tpu.vector_store %arg11[%c0_60, %c128_61], %88 {strides = array<i32>} : memref<16x1024xf32, #tpu.memory_space<vmem>>, vector<16x4xf32>,
    %c0_62 = arith.constant 0 : index
    %c256_63 = arith.constant 256 : index
    %118 = vector.load %arg11[%c0_62, %c256_63] : memref<16x1024xf32, #tpu.memory_space<vmem>>, vector<16x4xf32>
    tpu.vector_store %arg11[%c0_62, %c256_63], %93 {strides = array<i32>} : memref<16x1024xf32, #tpu.memory_space<vmem>>, vector<16x4xf32>,
    %c0_64 = arith.constant 0 : index
    %c384_65 = arith.constant 384 : index
    %119 = vector.load %arg11[%c0_64, %c384_65] : memref<16x1024xf32, #tpu.memory_space<vmem>>, vector<16x1xf32>
    tpu.vector_store %arg11[%c0_64, %c384_65], %113 {strides = array<i32>} : memref<16x1024xf32, #tpu.memory_space<vmem>>, vector<16x1xf32>,
    %c0_66 = arith.constant 0 : index
    %c512_67 = arith.constant 512 : index
    %120 = vector.load %arg11[%c0_66, %c512_67] : memref<16x1024xf32, #tpu.memory_space<vmem>>, vector<16x4xf32>
    tpu.vector_store %arg11[%c0_66, %c512_67], %94 {strides = array<i32>} : memref<16x1024xf32, #tpu.memory_space<vmem>>, vector<16x4xf32>,
    %c0_68 = arith.constant 0 : index
    %c640_69 = arith.constant 640 : index
    %121 = vector.load %arg11[%c0_68, %c640_69] : memref<16x1024xf32, #tpu.memory_space<vmem>>, vector<16x4xf32>
    tpu.vector_store %arg11[%c0_68, %c640_69], %97 {strides = array<i32>} : memref<16x1024xf32, #tpu.memory_space<vmem>>, vector<16x4xf32>,
    %c0_70 = arith.constant 0 : index
    %c768 = arith.constant 768 : index
    %122 = vector.load %arg11[%c0_70, %c768] : memref<16x1024xf32, #tpu.memory_space<vmem>>, vector<16x8xf32>
    tpu.vector_store %arg11[%c0_70, %c768], %63 {strides = array<i32>} : memref<16x1024xf32, #tpu.memory_space<vmem>>, vector<16x8xf32>,
    %c0_71 = arith.constant 0 : index
    %c896 = arith.constant 896 : index
    %123 = vector.load %arg11[%c0_71, %c896] : memref<16x1024xf32, #tpu.memory_space<vmem>>, vector<16x8xf32>
    tpu.vector_store %arg11[%c0_71, %c896], %64 {strides = array<i32>} : memref<16x1024xf32, #tpu.memory_space<vmem>>, vector<16x8xf32>,
    return
  }
}

</mosaic_0001>

<llo_original>
// kernel: pearl_agent_forward.1
$region0: #{pearl_agent_forward.1}
  #allocation0 [shape = 'u32[]', space=smem, size = 0x4, offset = 0x4, fixed_abs, tag = 'smem constant byte address 0x4 - core index']
  #allocation1 [shape = 'u32[144,128]{1,0:T(1,128)}', space=vmem, size = 0x12000, scoped, tag = 'internal scratch']
  %s0 = inlined_call_operand.vmem [shape: f32[16,21], index: 0, kind: input, shape index: {}]
  %s1 = inlined_call_operand.hbm [shape: f32[16,16], index: 1, kind: input, shape index: {}]
  %s2 = inlined_call_operand.vmem [shape: f32[16,4], index: 2, kind: input, shape index: {}]
  %s3 = inlined_call_operand.vmem [shape: f32[21,32], index: 3, kind: input, shape index: {}]
  %s4 = inlined_call_operand.vmem [shape: f32[32,32], index: 4, kind: input, shape index: {}]
  %s5 = inlined_call_operand.vmem [shape: f32[32,8], index: 5, kind: input, shape index: {}]
  %s6 = inlined_call_operand.vmem [shape: f32[16,32], index: 6, kind: input, shape index: {}]
  %s7 = inlined_call_operand.vmem [shape: f32[8,32], index: 7, kind: input, shape index: {}]
  %s8 = inlined_call_operand.vmem [shape: f32[32,32], index: 8, kind: input, shape index: {}]
  %s9 = inlined_call_operand.vmem [shape: f32[32,256], index: 9, kind: input, shape index: {}]
  %s10 = inlined_call_operand.vmem [shape: f32[1,896], index: 10, kind: input, shape index: {}]
  %s11 = inlined_call_operand.vmem [shape: f32[16,1024], index: 11, kind: output, shape index: {}]
  %s12 = sld [smem:[#allocation0]]
  $region58: #{pearl_agent_forward.1} parent=0
    _
  %s14 = ssub.s32 1, %s12
  %s15 = scalar_select 0, %s14, %s12
  $region1: #{pearl_agent_forward.1} parent=0
    #allocation2 [shape = 'u8[8192]{0}', space=vmem, size = 0x2000, scoped, tag = 'input window, operand 1, single buffered']
    #allocation3 [shape = 's32[1]{0}', space=sflag, size = 0x4, scoped, tag = 'scoped memory for pearl_agent_forward.1']
    %16 = vsyncpa [#allocation3], 0
    // Predicated region
    $region2: #{pearl_agent_forward.1} parent=1 // pred_check
      _
    $region3: #{pearl_agent_forward.1} parent=1 // pred_check_branch
      %18 = sbr.rel (0) target = $region5
    $region4: #{pearl_agent_forward.1} parent=1 // pred_region
      _
    $region5: #{pearl_agent_forward.1} parent=1 // pred_fallthru
      _
    // Predicated region
    $region6: #{pearl_agent_forward.1} parent=1 // pred_check
      _
    $region7: #{pearl_agent_forward.1} parent=1 // pred_check_branch
      %20 = sbr.rel (0) target = $region9
    $region8: #{pearl_agent_forward.1} parent=1 // pred_region
      %s22 = ssub.s32 256, 256
      %23 = vsyncadd [#allocation3], %s22
      %s24 = sshll.u32 [#allocation2], 4
      %s25 = int_to_ptr.vmem [resolvable:$true] %s24
      %30 = dma.hbm_to_vmem [thread:$0]  %s1, 256, %s25, [#allocation3], 128, 128, 8
    $region9: #{pearl_agent_forward.1} parent=1 // pred_fallthru
      _
    // Predicated region
    $region10: #{pearl_agent_forward.1} parent=1 // pred_check
      _
    $region11: #{pearl_agent_forward.1} parent=1 // pred_check_branch
      %32 = sbr.rel (0) target = $region13
    $region12: #{pearl_agent_forward.1} parent=1 // pred_region
      _
    $region13: #{pearl_agent_forward.1} parent=1 // pred_fallthru
      _
    // Predicated region
    $region14: #{pearl_agent_forward.1} parent=1 // pred_check
      _
    $region15: #{pearl_agent_forward.1} parent=1 // pred_check_branch
      %34 = sbr.rel (0) target = $region17
    $region16: #{pearl_agent_forward.1} parent=1 // pred_region
      _
    $region17: #{pearl_agent_forward.1} parent=1 // pred_fallthru
      _
    // Predicated region
    $region18: #{pearl_agent_forward.1} parent=1 // pred_check
      _
    $region19: #{pearl_agent_forward.1} parent=1 // pred_check_branch
      %36 = sbr.rel (0) target = $region21
    $region20: #{pearl_agent_forward.1} parent=1 // pred_region
      _
    $region21: #{pearl_agent_forward.1} parent=1 // pred_fallthru
      _
    // Predicated region
    $region22: #{pearl_agent_forward.1} parent=1 // pred_check
      _
    $region23: #{pearl_agent_forward.1} parent=1 // pred_check_branch
      %38 = sbr.rel (0) target = $region25
    $region24: #{pearl_agent_forward.1} parent=1 // pred_region
      _
    $region25: #{pearl_agent_forward.1} parent=1 // pred_fallthru
      _
    // Predicated region
    $region26: #{pearl_agent_forward.1} parent=1 // pred_check
      _
    $region27: #{pearl_agent_forward.1} parent=1 // pred_check_branch
      %40 = sbr.rel (0) target = $region29
    $region28: #{pearl_agent_forward.1} parent=1 // pred_region
      _
    $region29: #{pearl_agent_forward.1} parent=1 // pred_fallthru
      _
    // Predicated region
    $region30: #{pearl_agent_forward.1} parent=1 // pred_check
      _
    $region31: #{pearl_agent_forward.1} parent=1 // pred_check_branch
      %42 = sbr.rel (0) target = $region33
    $region32: #{pearl_agent_forward.1} parent=1 // pred_region
      _
    $region33: #{pearl_agent_forward.1} parent=1 // pred_fallthru
      _
    // Predicated region
    $region34: #{pearl_agent_forward.1} parent=1 // pred_check
      _
    $region35: #{pearl_agent_forward.1} parent=1 // pred_check_branch
      %44 = sbr.rel (0) target = $region37
    $region36: #{pearl_agent_forward.1} parent=1 // pred_region
      _
    $region37: #{pearl_agent_forward.1} parent=1 // pred_fallthru
      _
    // Predicated region
    $region38: #{pearl_agent_forward.1} parent=1 // pred_check
      _
    $region39: #{pearl_agent_forward.1} parent=1 // pred_check_branch
      %46 = sbr.rel (0) target = $region41
    $region40: #{pearl_agent_forward.1} parent=1 // pred_region
      _
    $region41: #{pearl_agent_forward.1} parent=1 // pred_fallthru
      _
    // Predicated region
    $region42: #{pearl_agent_forward.1} parent=1 // pred_check
      _
    $region43: #{pearl_agent_forward.1} parent=1 // pred_check_branch
      %48 = sbr.rel (0) target = $region45
    $region44: #{pearl_agent_forward.1} parent=1 // pred_region
      _
    $region45: #{pearl_agent_forward.1} parent=1 // pred_fallthru
      _
    // Predicated region
    $region46: #{pearl_agent_forward.1} parent=1 // pred_check
      _
    $region47: #{pearl_agent_forward.1} parent=1 // pred_check_branch
      %50 = sbr.rel (0) target = $region49
    $region48: #{pearl_agent_forward.1} parent=1 // pred_region
      %51 = dma.done [#allocation3], 256
    $region49: #{pearl_agent_forward.1} parent=1 // pred_fallthru
      _
    %v52 = vld [vmem:[%s0] sm:$0xff]
    %v53 = vld [vmem:[%s0 + $0x8] sm:$0xff]
    %v54 = vld [vmem:[%s3] sm:$0xff]
    %v55 = vld [vmem:[%s3 + $0x8] sm:$0xff]
    %v56 = vld [vmem:[%s3 + $0x10] sm:$0x1f]
    %v57 = vld [vmem:[%s10] sm:$0x1]
    %v59 = vlaneseq
    %v60 = vshrl.u32 %v59, 7
    %v61 = vsub.s32 0, %v60
    %v62 = vrot.slane %v57, %v61
    %vm64 = vcmask 171008
    %v66 = vsel %vm64, %v52, 0
    %v69 = vsel %vm64, %v53, 0
    %vm71 = vcmask 1044480
    %v73 = vsel %vm71, %v56, 0
    %75 = vmatprep.subr.mxu0 0.0
    %76 = vmatpush1.msra.mxu0 %v54
    %77 = vmatprep.subr.mxu0 0.0
    %78 = vmatpush1.msra.mxu0 %v55
    %79 = vmatprep.subr.mxu0 0.0
    %80 = vmatpush1.msra.mxu0 %v73
    %81 = vmatprep.subr.mxu0 0.0
    %82 = vmatpush1.msra.mxu0 0.0
    %83 = vmatprep.subr.mxu0 0.0
    %84 = vmatpush1.msra.mxu0 0.0
    %85 = vmatprep.subr.mxu0 0.0
    %86 = vmatpush1.msra.mxu0 0.0
    %87 = vmatprep.subr.mxu0 0.0
    %88 = vmatpush1.msra.mxu0 0.0
    %89 = vmatprep.subr.mxu0 0.0
    %90 = vmatpush1.msra.mxu0 0.0
    %91 = vmatprep.subr.mxu0 0.0
    %92 = vmatpush1.msra.mxu0 0.0
    %93 = vmatprep.subr.mxu0 0.0
    %94 = vmatpush1.msra.mxu0 0.0
    %95 = vmatprep.subr.mxu0 0.0
    %96 = vmatpush1.msra.mxu0 0.0
    %97 = vmatprep.subr.mxu0 0.0
    %98 = vmatpush1.msra.mxu0 0.0
    %99 = vmatprep.subr.mxu0 0.0
    %100 = vmatpush1.msra.mxu0 0.0
    %101 = vmatprep.subr.mxu0 0.0
    %102 = vmatpush1.msra.mxu0 0.0
    %103 = vmatprep.subr.mxu0 0.0
    %104 = vmatpush1.msra.mxu0 0.0
    %105 = vmatprep.subr.mxu0 0.0
    %106 = vmatpush1.msra.mxu0 0.0
    %107 = vmatprep.subr.mxu0 0.0
    %108 = vmatpush1.msra.mxu0 0.0
    %109 = vmatprep.subr.mxu0 0.0
    %110 = vmatpush1.msra.mxu0 0.0
    %111 = vmatprep.subr.mxu0 0.0
    %112 = vmatpush1.msra.mxu0 0.0
    %113 = vmatprep.subr.mxu0 0.0
    %114 = vmatpush1.msra.mxu0 0.0
    %115 = vmatprep.subr.mxu0 0.0
    %116 = vmatpush1.msra.mxu0 0.0
    %117 = vmatprep.subr.mxu0 0.0
    %118 = vmatpush1.msra.mxu0 0.0
    %119 = vmatprep.subr.mxu0 0.0
    %120 = vmatpush1.msra.mxu0 0.0
    %121 = vmatprep.subr.mxu0 0.0
    %122 = vmatpush1.msra.mxu0 0.0
    %123 = vmatprep.subr.mxu0 0.0
    %124 = vmatpush1.msra.mxu0 0.0
    %125 = vmatprep.subr.mxu0 0.0
    %126 = vmatpush1.msra.mxu0 0.0
    %127 = vmatprep.subr.mxu0 0.0
    %128 = vmatpush1.msra.mxu0 0.0
    %129 = vmatprep.subr.mxu0 0.0
    %130 = vmatpush1.msra.mxu0 0.0
    %131 = vmatprep.subr.mxu0 0.0
    %132 = vmatpush1.msra.mxu0 0.0
    %133 = vmatprep.subr.mxu0 0.0
    %134 = vmatpush1.msra.mxu0 0.0
    %135 = vmatprep.subr.mxu0 0.0
    %136 = vmatpush1.msra.mxu0 0.0
    %137 = vmatprep.subr.mxu0 0.0
    %138 = vmatpush1.msra.mxu0 0.0
    %139 = vmatprep.mubr.f32.mxu0 0.0
    %140 = vmatmul.mubr.f32.gmra.mrb[0].mxu0 %v66
    %v141 = vpop.f32.mrb[0].mxu0
    %v142 = vadd.f32 %v62, %v141
    %v143 = vpop.f32.mrb[0].mxu0
    %144 = vmatprep.mubr.f32.mxu0 0.0
    %145 = vmatmul.mubr.f32.gmra.mrb[0].mxu0 %v69
    %v146 = vpop.f32.mrb[0].mxu0
    %v147 = vadd.f32 %v62, %v146
    %v148 = vpop.f32.mrb[0].mxu0
    %149 = vdwg.mxu0
    %v150 = vmax.f32 %v142, 0.0
    %v151 = vmax.f32 %v147, 0.0
    %v152 = vld [vmem:[%s4] sm:$0xff]
    %v153 = vld [vmem:[%s4 + $0x8] sm:$0xff]
    %v154 = vld [vmem:[%s4 + $0x10] sm:$0xff]
    %v155 = vld [vmem:[%s4 + $0x18] sm:$0xff]
    %v156 = vld [vmem:[%s10 + $0x1] sm:$0x1]
    %v158 = vlaneseq
    %v159 = vshrl.u32 %v158, 7
    %v160 = vsub.s32 0, %v159
    %v161 = vrot.slane %v156, %v160
    %vm163 = vcmask 261120
    %v165 = vsel %vm163, %v150, 0
    %v168 = vsel %vm163, %v151, 0
    %170 = vmatprep.subr.mxu0 0.0
    %171 = vmatpush1.msra.mxu0 %v152
    %172 = vmatprep.subr.mxu0 0.0
    %173 = vmatpush1.msra.mxu0 %v153
    %174 = vmatprep.subr.mxu0 0.0
    %175 = vmatpush1.msra.mxu0 %v154
    %176 = vmatprep.subr.mxu0 0.0
    %177 = vmatpush1.msra.mxu0 %v155
    %178 = vmatprep.subr.mxu0 0.0
    %179 = vmatpush1.msra.mxu0 0.0
    %180 = vmatprep.subr.mxu0 0.0
    %181 = vmatpush1.msra.mxu0 0.0
    %182 = vmatprep.subr.mxu0 0.0
    %183 = vmatpush1.msra.mxu0 0.0
    %184 = vmatprep.subr.mxu0 0.0
    %185 = vmatpush1.msra.mxu0 0.0
    %186 = vmatprep.subr.mxu0 0.0
    %187 = vmatpush1.msra.mxu0 0.0
    %188 = vmatprep.subr.mxu0 0.0
    %189 = vmatpush1.msra.mxu0 0.0
    %190 = vmatprep.subr.mxu0 0.0
    %191 = vmatpush1.msra.mxu0 0.0
    %192 = vmatprep.subr.mxu0 0.0
    %193 = vmatpush1.msra.mxu0 0.0
    %194 = vmatprep.subr.mxu0 0.0
    %195 = vmatpush1.msra.mxu0 0.0
    %196 = vmatprep.subr.mxu0 0.0
    %197 = vmatpush1.msra.mxu0 0.0
    %198 = vmatprep.subr.mxu0 0.0
    %199 = vmatpush1.msra.mxu0 0.0
    %200 = vmatprep.subr.mxu0 0.0
    %201 = vmatpush1.msra.mxu0 0.0
    %202 = vmatprep.subr.mxu0 0.0
    %203 = vmatpush1.msra.mxu0 0.0
    %204 = vmatprep.subr.mxu0 0.0
    %205 = vmatpush1.msra.mxu0 0.0
    %206 = vmatprep.subr.mxu0 0.0
    %207 = vmatpush1.msra.mxu0 0.0
    %208 = vmatprep.subr.mxu0 0.0
    %209 = vmatpush1.msra.mxu0 0.0
    %210 = vmatprep.subr.mxu0 0.0
    %211 = vmatpush1.msra.mxu0 0.0
    %212 = vmatprep.subr.mxu0 0.0
    %213 = vmatpush1.msra.mxu0 0.0
    %214 = vmatprep.subr.mxu0 0.0
    %215 = vmatpush1.msra.mxu0 0.0
    %216 = vmatprep.subr.mxu0 0.0
    %217 = vmatpush1.msra.mxu0 0.0
    %218 = vmatprep.subr.mxu0 0.0
    %219 = vmatpush1.msra.mxu0 0.0
    %220 = vmatprep.subr.mxu0 0.0
    %221 = vmatpush1.msra.mxu0 0.0
    %222 = vmatprep.subr.mxu0 0.0
    %223 = vmatpush1.msra.mxu0 0.0
    %224 = vmatprep.subr.mxu0 0.0
    %225 = vmatpush1.msra.mxu0 0.0
    %226 = vmatprep.subr.mxu0 0.0
    %227 = vmatpush1.msra.mxu0 0.0
    %228 = vmatprep.subr.mxu0 0.0
    %229 = vmatpush1.msra.mxu0 0.0
    %230 = vmatprep.subr.mxu0 0.0
    %231 = vmatpush1.msra.mxu0 0.0
    %232 = vmatprep.subr.mxu0 0.0
    %233 = vmatpush1.msra.mxu0 0.0
    %234 = vmatprep.mubr.f32.mxu0 0.0
    %235 = vmatmul.mubr.f32.gmra.mrb[0].mxu0 %v165
    %v236 = vpop.f32.mrb[0].mxu0
    %v237 = vadd.f32 %v161, %v236
    %v238 = vpop.f32.mrb[0].mxu0
    %239 = vmatprep.mubr.f32.mxu0 0.0
    %240 = vmatmul.mubr.f32.gmra.mrb[0].mxu0 %v168
    %v241 = vpop.f32.mrb[0].mxu0
    %v242 = vadd.f32 %v161, %v241
    %v243 = vpop.f32.mrb[0].mxu0
    %244 = vdwg.mxu0
    %v245 = vmax.f32 %v237, 0.0
    %v246 = vmax.f32 %v242, 0.0
    %v247 = vld [vmem:[%s5] sm:$0xff]
    %v248 = vld [vmem:[%s5 + $0x8] sm:$0xff]
    %v249 = vld [vmem:[%s5 + $0x10] sm:$0xff]
    %v250 = vld [vmem:[%s5 + $0x18] sm:$0xff]
    %v251 = vld [vmem:[%s10 + $0x2] sm:$0x1]
    %v253 = vlaneseq
    %v254 = vshrl.u32 %v253, 7
    %v255 = vsub.s32 0, %v254
    %v256 = vrot.slane %v251, %v255
    %v259 = vsel %vm163, %v245, 0
    %v262 = vsel %vm163, %v246, 0
    %264 = vmatprep.subr.mxu0 0.0
    %265 = vmatpush1.msra.mxu0 %v247
    %266 = vmatprep.subr.mxu0 0.0
    %267 = vmatpush1.msra.mxu0 %v248
    %268 = vmatprep.subr.mxu0 0.0
    %269 = vmatpush1.msra.mxu0 %v249
    %270 = vmatprep.subr.mxu0 0.0
    %271 = vmatpush1.msra.mxu0 %v250
    %272 = vmatprep.subr.mxu0 0.0
    %273 = vmatpush1.msra.mxu0 0.0
    %274 = vmatprep.subr.mxu0 0.0
    %275 = vmatpush1.msra.mxu0 0.0
    %276 = vmatprep.subr.mxu0 0.0
    %277 = vmatpush1.msra.mxu0 0.0
    %278 = vmatprep.subr.mxu0 0.0
    %279 = vmatpush1.msra.mxu0 0.0
    %280 = vmatprep.subr.mxu0 0.0
    %281 = vmatpush1.msra.mxu0 0.0
    %282 = vmatprep.subr.mxu0 0.0
    %283 = vmatpush1.msra.mxu0 0.0
    %284 = vmatprep.subr.mxu0 0.0
    %285 = vmatpush1.msra.mxu0 0.0
    %286 = vmatprep.subr.mxu0 0.0
    %287 = vmatpush1.msra.mxu0 0.0
    %288 = vmatprep.subr.mxu0 0.0
    %289 = vmatpush1.msra.mxu0 0.0
    %290 = vmatprep.subr.mxu0 0.0
    %291 = vmatpush1.msra.mxu0 0.0
    %292 = vmatprep.subr.mxu0 0.0
    %293 = vmatpush1.msra.mxu0 0.0
    %294 = vmatprep.subr.mxu0 0.0
    %295 = vmatpush1.msra.mxu0 0.0
    %296 = vmatprep.subr.mxu0 0.0
    %297 = vmatpush1.msra.mxu0 0.0
    %298 = vmatprep.subr.mxu0 0.0
    %299 = vmatpush1.msra.mxu0 0.0
    %300 = vmatprep.subr.mxu0 0.0
    %301 = vmatpush1.msra.mxu0 0.0
    %302 = vmatprep.subr.mxu0 0.0
    %303 = vmatpush1.msra.mxu0 0.0
    %304 = vmatprep.subr.mxu0 0.0
    %305 = vmatpush1.msra.mxu0 0.0
    %306 = vmatprep.subr.mxu0 0.0
    %307 = vmatpush1.msra.mxu0 0.0
    %308 = vmatprep.subr.mxu0 0.0
    %309 = vmatpush1.msra.mxu0 0.0
    %310 = vmatprep.subr.mxu0 0.0
    %311 = vmatpush1.msra.mxu0 0.0
    %312 = vmatprep.subr.mxu0 0.0
    %313 = vmatpush1.msra.mxu0 0.0
    %314 = vmatprep.subr.mxu0 0.0
    %315 = vmatpush1.msra.mxu0 0.0
    %316 = vmatprep.subr.mxu0 0.0
    %317 = vmatpush1.msra.mxu0 0.0
    %318 = vmatprep.subr.mxu0 0.0
    %319 = vmatpush1.msra.mxu0 0.0
    %320 = vmatprep.subr.mxu0 0.0
    %321 = vmatpush1.msra.mxu0 0.0
    %322 = vmatprep.subr.mxu0 0.0
    %323 = vmatpush1.msra.mxu0 0.0
    %324 = vmatprep.subr.mxu0 0.0
    %325 = vmatpush1.msra.mxu0 0.0
    %326 = vmatprep.subr.mxu0 0.0
    %327 = vmatpush1.msra.mxu0 0.0
    %328 = vmatprep.mubr.f32.mxu0 0.0
    %329 = vmatmul.mubr.f32.gmra.mrb[0].mxu0 %v259
    %v330 = vpop.f32.mrb[0].mxu0
    %v331 = vadd.f32 %v256, %v330
    %v332 = vpop.f32.mrb[0].mxu0
    %333 = vmatprep.mubr.f32.mxu0 0.0
    %334 = vmatmul.mubr.f32.gmra.mrb[0].mxu0 %v262
    %v335 = vpop.f32.mrb[0].mxu0
    %v336 = vadd.f32 %v256, %v335
    %v337 = vpop.f32.mrb[0].mxu0
    %338 = vdwg.mxu0
    %v339 = vlaneseq
    %v340 = vshrl.u32 %v339, 7
    %v341 = vlaneseq
    %v342 = vand.u32 %v341, 127
    %v343 = vmul.u32 %v340, 8
    %vm344 = vcmp.ge.s32.totalorder %v342, %v343
    %v345 = vadd.s32 %v343, 8
    %vm346 = vcmp.lt.s32.totalorder %v342, %v345
    %vm347 = vmand %vm344, %vm346
    %v348 = vsel %vm347, 1, 0
    %v349 = vcvt.s32.f32 %v348
    %v350 = vadd.s32 %v340, 8
    %v351 = vmul.u32 %v342, 8
    %vm352 = vcmp.ge.s32.totalorder %v340, %v351
    %vm353 = vcmp.ge.s32.totalorder %v350, %v351
    %v354 = vadd.s32 %v351, 8
    %vm355 = vcmp.lt.s32.totalorder %v340, %v354
    %vm356 = vcmp.lt.s32.totalorder %v350, %v354
    %vm357 = vmand %vm352, %vm355
    %vm358 = vmand %vm353, %vm356
    %v359 = vsel %vm357, 1, 0
    %v360 = vsel %vm358, 1, 0
    %v361 = vcvt.s32.f32 %v359
    %v362 = vcvt.s32.f32 %v360
    %vm363 = vcmask 130048
    %v365 = vsel %vm363, %v349, 0
    %367 = vmatprep.subr.mxu0 0.0
    %368 = vmatpush1.msra.mxu0 %v331
    %369 = vmatprep.subr.mxu0 0.0
    %370 = vmatpush1.msra.mxu0 %v336
    %371 = vmatprep.subr.mxu0 0.0
    %372 = vmatpush1.msra.mxu0 0.0
    %373 = vmatprep.subr.mxu0 0.0
    %374 = vmatpush1.msra.mxu0 0.0
    %375 = vmatprep.subr.mxu0 0.0
    %376 = vmatpush1.msra.mxu0 0.0
    %377 = vmatprep.subr.mxu0 0.0
    %378 = vmatpush1.msra.mxu0 0.0
    %379 = vmatprep.subr.mxu0 0.0
    %380 = vmatpush1.msra.mxu0 0.0
    %381 = vmatprep.subr.mxu0 0.0
    %382 = vmatpush1.msra.mxu0 0.0
    %383 = vmatprep.subr.mxu0 0.0
    %384 = vmatpush1.msra.mxu0 0.0
    %385 = vmatprep.subr.mxu0 0.0
    %386 = vmatpush1.msra.mxu0 0.0
    %387 = vmatprep.subr.mxu0 0.0
    %388 = vmatpush1.msra.mxu0 0.0
    %389 = vmatprep.subr.mxu0 0.0
    %390 = vmatpush1.msra.mxu0 0.0
    %391 = vmatprep.subr.mxu0 0.0
    %392 = vmatpush1.msra.mxu0 0.0
    %393 = vmatprep.subr.mxu0 0.0
    %394 = vmatpush1.msra.mxu0 0.0
    %395 = vmatprep.subr.mxu0 0.0
    %396 = vmatpush1.msra.mxu0 0.0
    %397 = vmatprep.subr.mxu0 0.0
    %398 = vmatpush1.msra.mxu0 0.0
    %399 = vmatprep.subr.mxu0 0.0
    %400 = vmatpush1.msra.mxu0 0.0
    %401 = vmatprep.subr.mxu0 0.0
    %402 = vmatpush1.msra.mxu0 0.0
    %403 = vmatprep.subr.mxu0 0.0
    %404 = vmatpush1.msra.mxu0 0.0
    %405 = vmatprep.subr.mxu0 0.0
    %406 = vmatpush1.msra.mxu0 0.0
    %407 = vmatprep.subr.mxu0 0.0
    %408 = vmatpush1.msra.mxu0 0.0
    %409 = vmatprep.subr.mxu0 0.0
    %410 = vmatpush1.msra.mxu0 0.0
    %411 = vmatprep.subr.mxu0 0.0
    %412 = vmatpush1.msra.mxu0 0.0
    %413 = vmatprep.subr.mxu0 0.0
    %414 = vmatpush1.msra.mxu0 0.0
    %415 = vmatprep.subr.mxu0 0.0
    %416 = vmatpush1.msra.mxu0 0.0
    %417 = vmatprep.subr.mxu0 0.0
    %418 = vmatpush1.msra.mxu0 0.0
    %419 = vmatprep.subr.mxu0 0.0
    %420 = vmatpush1.msra.mxu0 0.0
    %421 = vmatprep.subr.mxu0 0.0
    %422 = vmatpush1.msra.mxu0 0.0
    %423 = vmatprep.subr.mxu0 0.0
    %424 = vmatpush1.msra.mxu0 0.0
    %425 = vmatprep.subr.mxu0 0.0
    %426 = vmatpush1.msra.mxu0 0.0
    %427 = vmatprep.subr.mxu0 0.0
    %428 = vmatpush1.msra.mxu0 0.0
    %429 = vmatprep.subr.mxu0 0.0
    %430 = vmatpush1.msra.mxu0 0.0
    %431 = vmatprep.mubr.f32.mxu0 0.0
    %432 = vmatmul.mubr.f32.gmra.mrb[0].mxu0 %v365
    %v433 = vpop.f32.mrb[0].mxu0
    %v434 = vadd.f32 0.0, %v433
    %v435 = vpop.f32.mrb[0].mxu0
    %436 = vdwg.mxu0
    %v437 = vmul.f32 %v434, 0.125
    %vm438 = vcmask 15360
    %v440 = vsel %vm438, %v361, 0
    %v443 = vsel %vm438, %v362, 0
    %vm445 = vcmask 1041408
    %v447 = vsel %vm445, %v437, 0
    %449 = vmatprep.subr.mxu0 0.0
    %450 = vmatpush1.msra.mxu0 %v447
    %451 = vmatprep.subr.mxu0 0.0
    %452 = vmatpush1.msra.mxu0 0.0
    %453 = vmatprep.subr.mxu0 0.0
    %454 = vmatpush1.msra.mxu0 0.0
    %455 = vmatprep.subr.mxu0 0.0
    %456 = vmatpush1.msra.mxu0 0.0
    %457 = vmatprep.subr.mxu0 0.0
    %458 = vmatpush1.msra.mxu0 0.0
    %459 = vmatprep.subr.mxu0 0.0
    %460 = vmatpush1.msra.mxu0 0.0
    %461 = vmatprep.subr.mxu0 0.0
    %462 = vmatpush1.msra.mxu0 0.0
    %463 = vmatprep.subr.mxu0 0.0
    %464 = vmatpush1.msra.mxu0 0.0
    %465 = vmatprep.subr.mxu0 0.0
    %466 = vmatpush1.msra.mxu0 0.0
    %467 = vmatprep.subr.mxu0 0.0
    %468 = vmatpush1.msra.mxu0 0.0
    %469 = vmatprep.subr.mxu0 0.0
    %470 = vmatpush1.msra.mxu0 0.0
    %471 = vmatprep.subr.mxu0 0.0
    %472 = vmatpush1.msra.mxu0 0.0
    %473 = vmatprep.subr.mxu0 0.0
    %474 = vmatpush1.msra.mxu0 0.0
    %475 = vmatprep.subr.mxu0 0.0
    %476 = vmatpush1.msra.mxu0 0.0
    %477 = vmatprep.subr.mxu0 0.0
    %478 = vmatpush1.msra.mxu0 0.0
    %479 = vmatprep.subr.mxu0 0.0
    %480 = vmatpush1.msra.mxu0 0.0
    %481 = vmatprep.subr.mxu0 0.0
    %482 = vmatpush1.msra.mxu0 0.0
    %483 = vmatprep.subr.mxu0 0.0
    %484 = vmatpush1.msra.mxu0 0.0
    %485 = vmatprep.subr.mxu0 0.0
    %486 = vmatpush1.msra.mxu0 0.0
    %487 = vmatprep.subr.mxu0 0.0
    %488 = vmatpush1.msra.mxu0 0.0
    %489 = vmatprep.subr.mxu0 0.0
    %490 = vmatpush1.msra.mxu0 0.0
    %491 = vmatprep.subr.mxu0 0.0
    %492 = vmatpush1.msra.mxu0 0.0
    %493 = vmatprep.subr.mxu0 0.0
    %494 = vmatpush1.msra.mxu0 0.0
    %495 = vmatprep.subr.mxu0 0.0
    %496 = vmatpush1.msra.mxu0 0.0
    %497 = vmatprep.subr.mxu0 0.0
    %498 = vmatpush1.msra.mxu0 0.0
    %499 = vmatprep.subr.mxu0 0.0
    %500 = vmatpush1.msra.mxu0 0.0
    %501 = vmatprep.subr.mxu0 0.0
    %502 = vmatpush1.msra.mxu0 0.0
    %503 = vmatprep.subr.mxu0 0.0
    %504 = vmatpush1.msra.mxu0 0.0
    %505 = vmatprep.subr.mxu0 0.0
    %506 = vmatpush1.msra.mxu0 0.0
    %507 = vmatprep.subr.mxu0 0.0
    %508 = vmatpush1.msra.mxu0 0.0
    %509 = vmatprep.subr.mxu0 0.0
    %510 = vmatpush1.msra.mxu0 0.0
    %511 = vmatprep.subr.mxu0 0.0
    %512 = vmatpush1.msra.mxu0 0.0
    %513 = vmatprep.mubr.f32.mxu0 0.0
    %514 = vmatmul.mubr.f32.gmra.mrb[0].mxu0 %v440
    %v515 = vpop.f32.mrb[0].mxu0
    %v516 = vadd.f32 0.0, %v515
    %v517 = vpop.f32.mrb[0].mxu0
    %518 = vmatprep.mubr.f32.mxu0 0.0
    %519 = vmatmul.mubr.f32.gmra.mrb[0].mxu0 %v443
    %v520 = vpop.f32.mrb[0].mxu0
    %v521 = vadd.f32 0.0, %v520
    %v522 = vpop.f32.mrb[0].mxu0
    %523 = vdwg.mxu0
    %v524 = vsub.f32 %v331, %v516
    %v525 = vsub.f32 %v336, %v521
    %v526 = vmul.f32 %v524, %v524
    %v527 = vmul.f32 %v525, %v525
    %528 = vmatprep.subr.mxu0 0.0
    %529 = vmatpush1.msra.mxu0 %v526
    %530 = vmatprep.subr.mxu0 0.0
    %531 = vmatpush1.msra.mxu0 %v527
    %532 = vmatprep.subr.mxu0 0.0
    %533 = vmatpush1.msra.mxu0 0.0
    %534 = vmatprep.subr.mxu0 0.0
    %535 = vmatpush1.msra.mxu0 0.0
    %536 = vmatprep.subr.mxu0 0.0
    %537 = vmatpush1.msra.mxu0 0.0
    %538 = vmatprep.subr.mxu0 0.0
    %539 = vmatpush1.msra.mxu0 0.0
    %540 = vmatprep.subr.mxu0 0.0
    %541 = vmatpush1.msra.mxu0 0.0
    %542 = vmatprep.subr.mxu0 0.0
    %543 = vmatpush1.msra.mxu0 0.0
    %544 = vmatprep.subr.mxu0 0.0
    %545 = vmatpush1.msra.mxu0 0.0
    %546 = vmatprep.subr.mxu0 0.0
    %547 = vmatpush1.msra.mxu0 0.0
    %548 = vmatprep.subr.mxu0 0.0
    %549 = vmatpush1.msra.mxu0 0.0
    %550 = vmatprep.subr.mxu0 0.0
    %551 = vmatpush1.msra.mxu0 0.0
    %552 = vmatprep.subr.mxu0 0.0
    %553 = vmatpush1.msra.mxu0 0.0
    %554 = vmatprep.subr.mxu0 0.0
    %555 = vmatpush1.msra.mxu0 0.0
    %556 = vmatprep.subr.mxu0 0.0
    %557 = vmatpush1.msra.mxu0 0.0
    %558 = vmatprep.subr.mxu0 0.0
    %559 = vmatpush1.msra.mxu0 0.0
    %560 = vmatprep.subr.mxu0 0.0
    %561 = vmatpush1.msra.mxu0 0.0
    %562 = vmatprep.subr.mxu0 0.0
    %563 = vmatpush1.msra.mxu0 0.0
    %564 = vmatprep.subr.mxu0 0.0
    %565 = vmatpush1.msra.mxu0 0.0
    %566 = vmatprep.subr.mxu0 0.0
    %567 = vmatpush1.msra.mxu0 0.0
    %568 = vmatprep.subr.mxu0 0.0
    %569 = vmatpush1.msra.mxu0 0.0
    %570 = vmatprep.subr.mxu0 0.0
    %571 = vmatpush1.msra.mxu0 0.0
    %572 = vmatprep.subr.mxu0 0.0
    %573 = vmatpush1.msra.mxu0 0.0
    %574 = vmatprep.subr.mxu0 0.0
    %575 = vmatpush1.msra.mxu0 0.0
    %576 = vmatprep.subr.mxu0 0.0
    %577 = vmatpush1.msra.mxu0 0.0
    %578 = vmatprep.subr.mxu0 0.0
    %579 = vmatpush1.msra.mxu0 0.0
    %580 = vmatprep.subr.mxu0 0.0
    %581 = vmatpush1.msra.mxu0 0.0
    %582 = vmatprep.subr.mxu0 0.0
    %583 = vmatpush1.msra.mxu0 0.0
    %584 = vmatprep.subr.mxu0 0.0
    %585 = vmatpush1.msra.mxu0 0.0
    %586 = vmatprep.subr.mxu0 0.0
    %587 = vmatpush1.msra.mxu0 0.0
    %588 = vmatprep.subr.mxu0 0.0
    %589 = vmatpush1.msra.mxu0 0.0
    %590 = vmatprep.subr.mxu0 0.0
    %591 = vmatpush1.msra.mxu0 0.0
    %592 = vmatprep.mubr.f32.mxu0 0.0
    %593 = vmatmul.mubr.f32.gmra.mrb[0].mxu0 %v365
    %v594 = vpop.f32.mrb[0].mxu0
    %v595 = vadd.f32 0.0, %v594
    %v596 = vpop.f32.mrb[0].mxu0
    %597 = vdwg.mxu0
    %v598 = vmul.f32 %v595, 0.14285715
    %v599 = vrsqrt.pop %v598
    %v600 = vmul.f32 %v598, %v599
    %vm601 = vcmp.eq.f32.partialorder %v598, inf
    %v602 = vsel %vm601, %v598, %v600
    %vm603 = vcmp.eq.f32.partialorder %v598, 0.0
    %v604 = vand.u32 %v598, 2147483648
    %v605 = vsel %vm603, %v604, %v602
    %v607 = vsel %vm445, %v605, 0
    %609 = vmatprep.subr.mxu0 0.0
    %610 = vmatpush1.msra.mxu0 %v607
    %611 = vmatprep.subr.mxu0 0.0
    %612 = vmatpush1.msra.mxu0 0.0
    %613 = vmatprep.subr.mxu0 0.0
    %614 = vmatpush1.msra.mxu0 0.0
    %615 = vmatprep.subr.mxu0 0.0
    %616 = vmatpush1.msra.mxu0 0.0
    %617 = vmatprep.subr.mxu0 0.0
    %618 = vmatpush1.msra.mxu0 0.0
    %619 = vmatprep.subr.mxu0 0.0
    %620 = vmatpush1.msra.mxu0 0.0
    %621 = vmatprep.subr.mxu0 0.0
    %622 = vmatpush1.msra.mxu0 0.0
    %623 = vmatprep.subr.mxu0 0.0
    %624 = vmatpush1.msra.mxu0 0.0
    %625 = vmatprep.subr.mxu0 0.0
    %626 = vmatpush1.msra.mxu0 0.0
    %627 = vmatprep.subr.mxu0 0.0
    %628 = vmatpush1.msra.mxu0 0.0
    %629 = vmatprep.subr.mxu0 0.0
    %630 = vmatpush1.msra.mxu0 0.0
    %631 = vmatprep.subr.mxu0 0.0
    %632 = vmatpush1.msra.mxu0 0.0
    %633 = vmatprep.subr.mxu0 0.0
    %634 = vmatpush1.msra.mxu0 0.0
    %635 = vmatprep.subr.mxu0 0.0
    %636 = vmatpush1.msra.mxu0 0.0
    %637 = vmatprep.subr.mxu0 0.0
    %638 = vmatpush1.msra.mxu0 0.0
    %639 = vmatprep.subr.mxu0 0.0
    %640 = vmatpush1.msra.mxu0 0.0
    %641 = vmatprep.subr.mxu0 0.0
    %642 = vmatpush1.msra.mxu0 0.0
    %643 = vmatprep.subr.mxu0 0.0
    %644 = vmatpush1.msra.mxu0 0.0
    %645 = vmatprep.subr.mxu0 0.0
    %646 = vmatpush1.msra.mxu0 0.0
    %647 = vmatprep.subr.mxu0 0.0
    %648 = vmatpush1.msra.mxu0 0.0
    %649 = vmatprep.subr.mxu0 0.0
    %650 = vmatpush1.msra.mxu0 0.0
    %651 = vmatprep.subr.mxu0 0.0
    %652 = vmatpush1.msra.mxu0 0.0
    %653 = vmatprep.subr.mxu0 0.0
    %654 = vmatpush1.msra.mxu0 0.0
    %655 = vmatprep.subr.mxu0 0.0
    %656 = vmatpush1.msra.mxu0 0.0
    %657 = vmatprep.subr.mxu0 0.0
    %658 = vmatpush1.msra.mxu0 0.0
    %659 = vmatprep.subr.mxu0 0.0
    %660 = vmatpush1.msra.mxu0 0.0
    %661 = vmatprep.subr.mxu0 0.0
    %662 = vmatpush1.msra.mxu0 0.0
    %663 = vmatprep.subr.mxu0 0.0
    %664 = vmatpush1.msra.mxu0 0.0
    %665 = vmatprep.subr.mxu0 0.0
    %666 = vmatpush1.msra.mxu0 0.0
    %667 = vmatprep.subr.mxu0 0.0
    %668 = vmatpush1.msra.mxu0 0.0
    %669 = vmatprep.subr.mxu0 0.0
    %670 = vmatpush1.msra.mxu0 0.0
    %671 = vmatprep.subr.mxu0 0.0
    %672 = vmatpush1.msra.mxu0 0.0
    %673 = vmatprep.mubr.f32.mxu0 0.0
    %674 = vmatmul.mubr.f32.gmra.mrb[0].mxu0 %v440
    %v675 = vpop.f32.mrb[0].mxu0
    %v676 = vadd.f32 0.0, %v675
    %v677 = vpop.f32.mrb[0].mxu0
    %678 = vmatprep.mubr.f32.mxu0 0.0
    %679 = vmatmul.mubr.f32.gmra.mrb[0].mxu0 %v443
    %v680 = vpop.f32.mrb[0].mxu0
    %v681 = vadd.f32 0.0, %v680
    %v682 = vpop.f32.mrb[0].mxu0
    %683 = vdwg.mxu0
    %v684 = vld [vmem:[#allocation2] sm:$0xff]
    %v685 = vld [vmem:[#allocation2 + $0x8] sm:$0xff]
    %v686 = vld [vmem:[%s6] sm:$0xff]
    %v687 = vld [vmem:[%s6 + $0x8] sm:$0xff]
    %v688 = vld [vmem:[%s7] sm:$0xff]
    %vm689 = vcmask 64512
    %v691 = vsel %vm689, %v516, 0
    %v694 = vsel %vm689, %v521, 0
    %696 = vmatprep.subr.mxu0 0.0
    %697 = vmatpush1.msra.mxu0 %v688
    %698 = vmatprep.subr.mxu0 0.0
    %699 = vmatpush1.msra.mxu0 0.0
    %700 = vmatprep.subr.mxu0 0.0
    %701 = vmatpush1.msra.mxu0 0.0
    %702 = vmatprep.subr.mxu0 0.0
    %703 = vmatpush1.msra.mxu0 0.0
    %704 = vmatprep.subr.mxu0 0.0
    %705 = vmatpush1.msra.mxu0 0.0
    %706 = vmatprep.subr.mxu0 0.0
    %707 = vmatpush1.msra.mxu0 0.0
    %708 = vmatprep.subr.mxu0 0.0
    %709 = vmatpush1.msra.mxu0 0.0
    %710 = vmatprep.subr.mxu0 0.0
    %711 = vmatpush1.msra.mxu0 0.0
    %712 = vmatprep.subr.mxu0 0.0
    %713 = vmatpush1.msra.mxu0 0.0
    %714 = vmatprep.subr.mxu0 0.0
    %715 = vmatpush1.msra.mxu0 0.0
    %716 = vmatprep.subr.mxu0 0.0
    %717 = vmatpush1.msra.mxu0 0.0
    %718 = vmatprep.subr.mxu0 0.0
    %719 = vmatpush1.msra.mxu0 0.0
    %720 = vmatprep.subr.mxu0 0.0
    %721 = vmatpush1.msra.mxu0 0.0
    %722 = vmatprep.subr.mxu0 0.0
    %723 = vmatpush1.msra.mxu0 0.0
    %724 = vmatprep.subr.mxu0 0.0
    %725 = vmatpush1.msra.mxu0 0.0
    %726 = vmatprep.subr.mxu0 0.0
    %727 = vmatpush1.msra.mxu0 0.0
    %728 = vmatprep.subr.mxu0 0.0
    %729 = vmatpush1.msra.mxu0 0.0
    %730 = vmatprep.subr.mxu0 0.0
    %731 = vmatpush1.msra.mxu0 0.0
    %732 = vmatprep.subr.mxu0 0.0
    %733 = vmatpush1.msra.mxu0 0.0
    %734 = vmatprep.subr.mxu0 0.0
    %735 = vmatpush1.msra.mxu0 0.0
    %736 = vmatprep.subr.mxu0 0.0
    %737 = vmatpush1.msra.mxu0 0.0
    %738 = vmatprep.subr.mxu0 0.0
    %739 = vmatpush1.msra.mxu0 0.0
    %740 = vmatprep.subr.mxu0 0.0
    %741 = vmatpush1.msra.mxu0 0.0
    %742 = vmatprep.subr.mxu0 0.0
    %743 = vmatpush1.msra.mxu0 0.0
    %744 = vmatprep.subr.mxu0 0.0
    %745 = vmatpush1.msra.mxu0 0.0
    %746 = vmatprep.subr.mxu0 0.0
    %747 = vmatpush1.msra.mxu0 0.0
    %748 = vmatprep.subr.mxu0 0.0
    %749 = vmatpush1.msra.mxu0 0.0
    %750 = vmatprep.subr.mxu0 0.0
    %751 = vmatpush1.msra.mxu0 0.0
    %752 = vmatprep.subr.mxu0 0.0
    %753 = vmatpush1.msra.mxu0 0.0
    %754 = vmatprep.subr.mxu0 0.0
    %755 = vmatpush1.msra.mxu0 0.0
    %756 = vmatprep.subr.mxu0 0.0
    %757 = vmatpush1.msra.mxu0 0.0
    %758 = vmatprep.subr.mxu0 0.0
    %759 = vmatpush1.msra.mxu0 0.0
    %760 = vmatprep.mubr.f32.mxu0 0.0
    %761 = vmatmul.mubr.f32.gmra.mrb[0].mxu0 %v691
    %v762 = vpop.f32.mrb[0].mxu0
    %v763 = vadd.f32 0.0, %v762
    %v764 = vpop.f32.mrb[0].mxu0
    %765 = vmatprep.mubr.f32.mxu0 0.0
    %766 = vmatmul.mubr.f32.gmra.mrb[0].mxu0 %v694
    %v767 = vpop.f32.mrb[0].mxu0
    %v768 = vadd.f32 0.0, %v767
    %v769 = vpop.f32.mrb[0].mxu0
    %770 = vdwg.mxu0
    %v772 = vsel %vm363, %v684, 0
    %v775 = vsel %vm363, %v685, 0
    %777 = vmatprep.subr.mxu0 0.0
    %778 = vmatpush1.msra.mxu0 %v686
    %779 = vmatprep.subr.mxu0 0.0
    %780 = vmatpush1.msra.mxu0 %v687
    %781 = vmatprep.subr.mxu0 0.0
    %782 = vmatpush1.msra.mxu0 0.0
    %783 = vmatprep.subr.mxu0 0.0
    %784 = vmatpush1.msra.mxu0 0.0
    %785 = vmatprep.subr.mxu0 0.0
    %786 = vmatpush1.msra.mxu0 0.0
    %787 = vmatprep.subr.mxu0 0.0
    %788 = vmatpush1.msra.mxu0 0.0
    %789 = vmatprep.subr.mxu0 0.0
    %790 = vmatpush1.msra.mxu0 0.0
    %791 = vmatprep.subr.mxu0 0.0
    %792 = vmatpush1.msra.mxu0 0.0
    %793 = vmatprep.subr.mxu0 0.0
    %794 = vmatpush1.msra.mxu0 0.0
    %795 = vmatprep.subr.mxu0 0.0
    %796 = vmatpush1.msra.mxu0 0.0
    %797 = vmatprep.subr.mxu0 0.0
    %798 = vmatpush1.msra.mxu0 0.0
    %799 = vmatprep.subr.mxu0 0.0
    %800 = vmatpush1.msra.mxu0 0.0
    %801 = vmatprep.subr.mxu0 0.0
    %802 = vmatpush1.msra.mxu0 0.0
    %803 = vmatprep.subr.mxu0 0.0
    %804 = vmatpush1.msra.mxu0 0.0
    %805 = vmatprep.subr.mxu0 0.0
    %806 = vmatpush1.msra.mxu0 0.0
    %807 = vmatprep.subr.mxu0 0.0
    %808 = vmatpush1.msra.mxu0 0.0
    %809 = vmatprep.subr.mxu0 0.0
    %810 = vmatpush1.msra.mxu0 0.0
    %811 = vmatprep.subr.mxu0 0.0
    %812 = vmatpush1.msra.mxu0 0.0
    %813 = vmatprep.subr.mxu0 0.0
    %814 = vmatpush1.msra.mxu0 0.0
    %815 = vmatprep.subr.mxu0 0.0
    %816 = vmatpush1.msra.mxu0 0.0
    %817 = vmatprep.subr.mxu0 0.0
    %818 = vmatpush1.msra.mxu0 0.0
    %819 = vmatprep.subr.mxu0 0.0
    %820 = vmatpush1.msra.mxu0 0.0
    %821 = vmatprep.subr.mxu0 0.0
    %822 = vmatpush1.msra.mxu0 0.0
    %823 = vmatprep.subr.mxu0 0.0
    %824 = vmatpush1.msra.mxu0 0.0
    %825 = vmatprep.subr.mxu0 0.0
    %826 = vmatpush1.msra.mxu0 0.0
    %827 = vmatprep.subr.mxu0 0.0
    %828 = vmatpush1.msra.mxu0 0.0
    %829 = vmatprep.subr.mxu0 0.0
    %830 = vmatpush1.msra.mxu0 0.0
    %831 = vmatprep.subr.mxu0 0.0
    %832 = vmatpush1.msra.mxu0 0.0
    %833 = vmatprep.subr.mxu0 0.0
    %834 = vmatpush1.msra.mxu0 0.0
    %835 = vmatprep.subr.mxu0 0.0
    %836 = vmatpush1.msra.mxu0 0.0
    %837 = vmatprep.subr.mxu0 0.0
    %838 = vmatpush1.msra.mxu0 0.0
    %839 = vmatprep.subr.mxu0 0.0
    %840 = vmatpush1.msra.mxu0 0.0
    %841 = vmatprep.mubr.f32.mxu0 0.0
    %842 = vmatmul.mubr.f32.gmra.mrb[0].mxu0 %v772
    %v843 = vpop.f32.mrb[0].mxu0
    %v844 = vadd.f32 %v763, %v843
    %v845 = vpop.f32.mrb[0].mxu0
    %846 = vmatprep.mubr.f32.mxu0 0.0
    %847 = vmatmul.mubr.f32.gmra.mrb[0].mxu0 %v775
    %v848 = vpop.f32.mrb[0].mxu0
    %v849 = vadd.f32 %v768, %v848
    %v850 = vpop.f32.mrb[0].mxu0
    %851 = vdwg.mxu0
    %v852 = vld [vmem:[%s10 + $0x3] sm:$0x1]
    %v854 = vlaneseq
    %v855 = vshrl.u32 %v854, 7
    %v856 = vsub.s32 0, %v855
    %v857 = vrot.slane %v852, %v856
    %v859 = vadd.f32 %v844, %v857
    %v860 = vadd.f32 %v849, %v857
    %v861 = vmax.f32 %v859, 0.0
    %v862 = vmax.f32 %v860, 0.0
    %v863 = vld [vmem:[%s8] sm:$0xff]
    %v864 = vld [vmem:[%s8 + $0x8] sm:$0xff]
    %v865 = vld [vmem:[%s8 + $0x10] sm:$0xff]
    %v866 = vld [vmem:[%s8 + $0x18] sm:$0xff]
    %v867 = vld [vmem:[%s10 + $0x4] sm:$0x1]
    %v869 = vlaneseq
    %v870 = vshrl.u32 %v869, 7
    %v871 = vsub.s32 0, %v870
    %v872 = vrot.slane %v867, %v871
    %v875 = vsel %vm163, %v861, 0
    %v878 = vsel %vm163, %v862, 0
    %880 = vmatprep.subr.mxu0 0.0
    %881 = vmatpush1.msra.mxu0 %v863
    %882 = vmatprep.subr.mxu0 0.0
    %883 = vmatpush1.msra.mxu0 %v864
    %884 = vmatprep.subr.mxu0 0.0
    %885 = vmatpush1.msra.mxu0 %v865
    %886 = vmatprep.subr.mxu0 0.0
    %887 = vmatpush1.msra.mxu0 %v866
    %888 = vmatprep.subr.mxu0 0.0
    %889 = vmatpush1.msra.mxu0 0.0
    %890 = vmatprep.subr.mxu0 0.0
    %891 = vmatpush1.msra.mxu0 0.0
    %892 = vmatprep.subr.mxu0 0.0
    %893 = vmatpush1.msra.mxu0 0.0
    %894 = vmatprep.subr.mxu0 0.0
    %895 = vmatpush1.msra.mxu0 0.0
    %896 = vmatprep.subr.mxu0 0.0
    %897 = vmatpush1.msra.mxu0 0.0
    %898 = vmatprep.subr.mxu0 0.0
    %899 = vmatpush1.msra.mxu0 0.0
    %900 = vmatprep.subr.mxu0 0.0
    %901 = vmatpush1.msra.mxu0 0.0
    %902 = vmatprep.subr.mxu0 0.0
    %903 = vmatpush1.msra.mxu0 0.0
    %904 = vmatprep.subr.mxu0 0.0
    %905 = vmatpush1.msra.mxu0 0.0
    %906 = vmatprep.subr.mxu0 0.0
    %907 = vmatpush1.msra.mxu0 0.0
    %908 = vmatprep.subr.mxu0 0.0
    %909 = vmatpush1.msra.mxu0 0.0
    %910 = vmatprep.subr.mxu0 0.0
    %911 = vmatpush1.msra.mxu0 0.0
    %912 = vmatprep.subr.mxu0 0.0
    %913 = vmatpush1.msra.mxu0 0.0
    %914 = vmatprep.subr.mxu0 0.0
    %915 = vmatpush1.msra.mxu0 0.0
    %916 = vmatprep.subr.mxu0 0.0
    %917 = vmatpush1.msra.mxu0 0.0
    %918 = vmatprep.subr.mxu0 0.0
    %919 = vmatpush1.msra.mxu0 0.0
    %920 = vmatprep.subr.mxu0 0.0
    %921 = vmatpush1.msra.mxu0 0.0
    %922 = vmatprep.subr.mxu0 0.0
    %923 = vmatpush1.msra.mxu0 0.0
    %924 = vmatprep.subr.mxu0 0.0
    %925 = vmatpush1.msra.mxu0 0.0
    %926 = vmatprep.subr.mxu0 0.0
    %927 = vmatpush1.msra.mxu0 0.0
    %928 = vmatprep.subr.mxu0 0.0
    %929 = vmatpush1.msra.mxu0 0.0
    %930 = vmatprep.subr.mxu0 0.0
    %931 = vmatpush1.msra.mxu0 0.0
    %932 = vmatprep.subr.mxu0 0.0
    %933 = vmatpush1.msra.mxu0 0.0
    %934 = vmatprep.subr.mxu0 0.0
    %935 = vmatpush1.msra.mxu0 0.0
    %936 = vmatprep.subr.mxu0 0.0
    %937 = vmatpush1.msra.mxu0 0.0
    %938 = vmatprep.subr.mxu0 0.0
    %939 = vmatpush1.msra.mxu0 0.0
    %940 = vmatprep.subr.mxu0 0.0
    %941 = vmatpush1.msra.mxu0 0.0
    %942 = vmatprep.subr.mxu0 0.0
    %943 = vmatpush1.msra.mxu0 0.0
    %944 = vmatprep.mubr.f32.mxu0 0.0
    %945 = vmatmul.mubr.f32.gmra.mrb[0].mxu0 %v875
    %v946 = vpop.f32.mrb[0].mxu0
    %v947 = vadd.f32 %v872, %v946
    %v948 = vpop.f32.mrb[0].mxu0
    %949 = vmatprep.mubr.f32.mxu0 0.0
    %950 = vmatmul.mubr.f32.gmra.mrb[0].mxu0 %v878
    %v951 = vpop.f32.mrb[0].mxu0
    %v952 = vadd.f32 %v872, %v951
    %v953 = vpop.f32.mrb[0].mxu0
    %954 = vdwg.mxu0
    %v955 = vmax.f32 %v947, 0.0
    %v956 = vmax.f32 %v952, 0.0
    %v957 = vld [vmem:[%s9] sm:$0xff]
    %v958 = vld [vmem:[%s9 + $0x8] sm:$0xff]
    %v959 = vld [vmem:[%s9 + $0x10] sm:$0xff]
    %v960 = vld [vmem:[%s9 + $0x18] sm:$0xff]
    %v961 = vld [vmem:[%s9 + $0x20] sm:$0xff]
    %v962 = vld [vmem:[%s9 + $0x28] sm:$0xff]
    %v963 = vld [vmem:[%s9 + $0x30] sm:$0xff]
    %v964 = vld [vmem:[%s9 + $0x38] sm:$0xff]
    %v965 = vld [vmem:[%s10 + $0x5] sm:$0x3]
    %v967 = vlaneseq
    %v968 = vshrl.u32 %v967, 7
    %v969 = vsub.s32 0, %v968
    %v970 = vrot.slane %v965, %v969
    %v971 = vlaneseq
    %v972 = vshrl.u32 %v971, 7
    %v973 = vsub.s32 1, %v972
    %v974 = vrot.slane %v965, %v973
    %v978 = vsel %vm163, %v955, 0
    %v981 = vsel %vm163, %v956, 0
    %983 = vmatprep.subr.mxu0 %v958
    %984 = vmatpush1.msra.mxu0 %v957
    %985 = vmatprep.subr.mxu0 %v960
    %986 = vmatpush1.msra.mxu0 %v959
    %987 = vmatprep.subr.mxu0 %v962
    %988 = vmatpush1.msra.mxu0 %v961
    %989 = vmatprep.subr.mxu0 %v964
    %990 = vmatpush1.msra.mxu0 %v963
    %991 = vmatprep.subr.mxu0 0.0
    %992 = vmatpush1.msra.mxu0 0.0
    %993 = vmatprep.subr.mxu0 0.0
    %994 = vmatpush1.msra.mxu0 0.0
    %995 = vmatprep.subr.mxu0 0.0
    %996 = vmatpush1.msra.mxu0 0.0
    %997 = vmatprep.subr.mxu0 0.0
    %998 = vmatpush1.msra.mxu0 0.0
    %999 = vmatprep.subr.mxu0 0.0
    %1000 = vmatpush1.msra.mxu0 0.0
    %1001 = vmatprep.subr.mxu0 0.0
    %1002 = vmatpush1.msra.mxu0 0.0
    %1003 = vmatprep.subr.mxu0 0.0
    %1004 = vmatpush1.msra.mxu0 0.0
    %1005 = vmatprep.subr.mxu0 0.0
    %1006 = vmatpush1.msra.mxu0 0.0
    %1007 = vmatprep.subr.mxu0 0.0
    %1008 = vmatpush1.msra.mxu0 0.0
    %1009 = vmatprep.subr.mxu0 0.0
    %1010 = vmatpush1.msra.mxu0 0.0
    %1011 = vmatprep.subr.mxu0 0.0
    %1012 = vmatpush1.msra.mxu0 0.0
    %1013 = vmatprep.subr.mxu0 0.0
    %1014 = vmatpush1.msra.mxu0 0.0
    %1015 = vmatprep.subr.mxu0 0.0
    %1016 = vmatpush1.msra.mxu0 0.0
    %1017 = vmatprep.subr.mxu0 0.0
    %1018 = vmatpush1.msra.mxu0 0.0
    %1019 = vmatprep.subr.mxu0 0.0
    %1020 = vmatpush1.msra.mxu0 0.0
    %1021 = vmatprep.subr.mxu0 0.0
    %1022 = vmatpush1.msra.mxu0 0.0
    %1023 = vmatprep.subr.mxu0 0.0
    %1024 = vmatpush1.msra.mxu0 0.0
    %1025 = vmatprep.subr.mxu0 0.0
    %1026 = vmatpush1.msra.mxu0 0.0
    %1027 = vmatprep.subr.mxu0 0.0
    %1028 = vmatpush1.msra.mxu0 0.0
    %1029 = vmatprep.subr.mxu0 0.0
    %1030 = vmatpush1.msra.mxu0 0.0
    %1031 = vmatprep.subr.mxu0 0.0
    %1032 = vmatpush1.msra.mxu0 0.0
    %1033 = vmatprep.subr.mxu0 0.0
    %1034 = vmatpush1.msra.mxu0 0.0
    %1035 = vmatprep.subr.mxu0 0.0
    %1036 = vmatpush1.msra.mxu0 0.0
    %1037 = vmatprep.subr.mxu0 0.0
    %1038 = vmatpush1.msra.mxu0 0.0
    %1039 = vmatprep.subr.mxu0 0.0
    %1040 = vmatpush1.msra.mxu0 0.0
    %1041 = vmatprep.subr.mxu0 0.0
    %1042 = vmatpush1.msra.mxu0 0.0
    %1043 = vmatprep.subr.mxu0 0.0
    %1044 = vmatpush1.msra.mxu0 0.0
    %1045 = vmatprep.subr.mxu0 0.0
    %1046 = vmatpush1.msra.mxu0 0.0
    %1047 = vmatprep.mubr.f32.mxu0 0.0
    %1048 = vmatmul.mubr.f32.gmra.mrb[0].mxu0 %v978
    %v1049 = vpop.f32.mrb[0].mxu0
    %v1050 = vadd.f32 %v970, %v1049
    %v1051 = vpop.f32.mrb[0].mxu0
    %v1052 = vadd.f32 %v974, %v1051
    %1053 = vmatprep.mubr.f32.mxu0 0.0
    %1054 = vmatmul.mubr.f32.gmra.mrb[0].mxu0 %v981
    %v1055 = vpop.f32.mrb[0].mxu0
    %v1056 = vadd.f32 %v970, %v1055
    %v1057 = vpop.f32.mrb[0].mxu0
    %v1058 = vadd.f32 %v974, %v1057
    %1059 = vdwg.mxu0
    %v1060 = vmax.f32 %v1052, -20.0
    %v1061 = vmax.f32 %v1058, -20.0
    %v1062 = vmin.f32 %v1060, 2.0
    %v1063 = vmin.f32 %v1061, 2.0
    %v1064 = vmul.f32 %v1062, 1.442695
    %v1065 = vpow.pop %v1064
    %v1066 = vmul.f32 %v1063, 1.442695
    %v1067 = vpow.pop %v1066
    %v1068 = vld [vmem:[%s2] sm:$0xff]
    %v1069 = vld [vmem:[%s2 + $0x8] sm:$0xff]
    %v1070 = vmul.f32 %v1065, %v1068
    %v1071 = vmul.f32 %v1067, %v1069
    %v1072 = vadd.f32 %v1050, %v1070
    %v1073 = vadd.f32 %v1056, %v1071
    %v1074 = vtanh.pop %v1072
    %v1075 = vtanh.pop %v1073
    %v1076 = vmul.f32 %v1068, -0.5
    %v1077 = vmul.f32 %v1069, -0.5
    %v1078 = vmul.f32 %v1076, %v1068
    %v1079 = vmul.f32 %v1077, %v1069
    %v1080 = vsub.f32 %v1078, %v1062
    %v1081 = vsub.f32 %v1079, %v1063
    %v1082 = vsub.f32 %v1080, 0.9189385
    %v1083 = vsub.f32 %v1081, 0.9189385
    %v1084 = vmul.f32 %v1074, %v1074
    %v1085 = vmul.f32 %v1075, %v1075
    %v1086 = vsub.f32 1.0, %v1084
    %v1087 = vsub.f32 1.0, %v1085
    %v1088 = vadd.f32 %v1086, 1e-06
    %v1089 = vadd.f32 %v1087, 1e-06
    %v1090 = vlog2.pop %v1088
    %v1091 = vmul.f32 %v1090, 0.6931472
    %v1092 = vlog2.pop %v1089
    %v1093 = vmul.f32 %v1092, 0.6931472
    %v1094 = vsub.f32 %v1082, %v1091
    %v1095 = vsub.f32 %v1083, %v1093
    %vm1096 = vcmask 31744
    %v1097 = vsel %vm1096, %v1094, 0.0
    %1098 = vadd.xlane.f32.xlu0 %v1097
    %v1099 = vpop.xlane.xlu0 %1098
    %v1100 = vsel %vm1096, %v1095, 0.0
    %1101 = vadd.xlane.f32.xlu0 %v1100
    %v1102 = vpop.xlane.xlu0 %1101
    %1103 = vst [vmem:[%s11] sm:$0xff] 0.0
    %1104 = vst [vmem:[%s11 + $0x8] sm:$0xff] 0.0
    %1105 = vst [vmem:[%s11 + $0x10] sm:$0xff] 0.0
    %1106 = vst [vmem:[%s11 + $0x18] sm:$0xff] 0.0
    %1107 = vst [vmem:[%s11 + $0x20] sm:$0xff] 0.0
    %1108 = vst [vmem:[%s11 + $0x28] sm:$0xff] 0.0
    %1109 = vst [vmem:[%s11 + $0x30] sm:$0xff] 0.0
    %1110 = vst [vmem:[%s11 + $0x38] sm:$0xff] 0.0
    %1111 = vst [vmem:[%s11 + $0x40] sm:$0xff] 0.0
    %1112 = vst [vmem:[%s11 + $0x48] sm:$0xff] 0.0
    %1113 = vst [vmem:[%s11 + $0x50] sm:$0xff] 0.0
    %1114 = vst [vmem:[%s11 + $0x58] sm:$0xff] 0.0
    %1115 = vst [vmem:[%s11 + $0x60] sm:$0xff] 0.0
    %1116 = vst [vmem:[%s11 + $0x68] sm:$0xff] 0.0
    %1117 = vst [vmem:[%s11 + $0x70] sm:$0xff] 0.0
    %1118 = vst [vmem:[%s11 + $0x78] sm:$0xff] 0.0
    %1119 = vst.msk [vmem:[%s11] sm:$0xff] %vm1096, %v1074
    %1120 = vst.msk [vmem:[%s11 + $0x40] sm:$0xff] %vm1096, %v1075
    %1121 = vst.msk [vmem:[%s11 + $0x8] sm:$0xff] %vm1096, %v1050
    %1122 = vst.msk [vmem:[%s11 + $0x48] sm:$0xff] %vm1096, %v1056
    %1123 = vst.msk [vmem:[%s11 + $0x10] sm:$0xff] %vm1096, %v1062
    %1124 = vst.msk [vmem:[%s11 + $0x50] sm:$0xff] %vm1096, %v1063
    %vm1125 = vcmask 7168
    %1126 = vst.msk [vmem:[%s11 + $0x18] sm:$0xff] %vm1125, %v1099
    %1127 = vst.msk [vmem:[%s11 + $0x58] sm:$0xff] %vm1125, %v1102
    %1128 = vst.msk [vmem:[%s11 + $0x20] sm:$0xff] %vm1096, %v1065
    %1129 = vst.msk [vmem:[%s11 + $0x60] sm:$0xff] %vm1096, %v1067
    %1130 = vst.msk [vmem:[%s11 + $0x28] sm:$0xff] %vm1096, %v1072
    %1131 = vst.msk [vmem:[%s11 + $0x68] sm:$0xff] %vm1096, %v1073
    %1132 = vst.msk [vmem:[%s11 + $0x30] sm:$0xff] %vm689, %v516
    %1133 = vst.msk [vmem:[%s11 + $0x70] sm:$0xff] %vm689, %v521
    %1134 = vst.msk [vmem:[%s11 + $0x38] sm:$0xff] %vm689, %v676
    %1135 = vst.msk [vmem:[%s11 + $0x78] sm:$0xff] %vm689, %v681
    // Predicated region
    $region50: #{pearl_agent_forward.1} parent=1 // pred_check
      _
    $region51: #{pearl_agent_forward.1} parent=1 // pred_check_branch
      %1137 = sbr.rel (0) target = $region53
    $region52: #{pearl_agent_forward.1} parent=1 // pred_region
      _
    $region53: #{pearl_agent_forward.1} parent=1 // pred_fallthru
      _
    // Predicated region
    $region54: #{pearl_agent_forward.1} parent=1 // pred_check
      _
    $region55: #{pearl_agent_forward.1} parent=1 // pred_check_branch
      %1139 = sbr.rel (0) target = $region57
    $region56: #{pearl_agent_forward.1} parent=1 // pred_region
      _
    $region57: #{pearl_agent_forward.1} parent=1 // pred_fallthru
      _
    %1140 = vsyncpa [#allocation3], 1

</llo_original>
